<compile_context>
chip_gen: v6e
topology: v6e:2x2x1
jax: 0.10.0
libtpu: 0.0.40
codegen_flags: <defaults>
</compile_context>

<pallas_src>
import jax
import jax.numpy as jnp
import numpy as np
from jax.experimental import pallas as pl
from jax.experimental.pallas import tpu as pltpu

_VH = 128  # value-stream hidden width (fixed by the PyTorch module)


def _round_up(x, m):
    return (x + m - 1) // m * m


def _cdiv(a, b):
    return -(-a // b)


# ----------------------------------------------------------------------------
# Parameter packing (done once; reuse across forward calls)
# ----------------------------------------------------------------------------
def pack_params(params, input_dim, hidden_dim, output_dim):
    (w1, b1, w2, b2, w3, b3, wv1, bv1, wv2, bv2, wa, ba) = params

    F_in = _round_up(input_dim, 128)        # first-layer K pad only
    F_h = _round_up(hidden_dim, 128)        # everything downstream
    OUT_P = _round_up(output_dim, 128)
    HEAD_W = _VH + OUT_P                    # fused [value-hidden | advantage]
    AUXW = max(F_h, HEAD_W)

    # Layer-1 weights: bf16, zero-padded (padded rows/cols contribute exact 0).
    w1p = jnp.zeros((F_in, F_h), jnp.float32)
    w1p = w1p.at[:input_dim, :hidden_dim].set(w1).astype(jnp.bfloat16)

    # Remaining weights packed into one bf16 slab: [ w2 | w3 | wv1 | wa ].
    wrest = jnp.zeros((F_h, 2 * F_h + HEAD_W), jnp.float32)
    wrest = wrest.at[:hidden_dim, 0:hidden_dim].set(w2)
    wrest = wrest.at[:hidden_dim, F_h:F_h + hidden_dim].set(w3)
    wrest = wrest.at[:hidden_dim, 2 * F_h:2 * F_h + _VH].set(wv1)
    wrest = wrest.at[:hidden_dim,
                     2 * F_h + _VH:2 * F_h + _VH + output_dim].set(wa)
    wrest = wrest.astype(jnp.bfloat16)

    # Aux slab (f32): biases, value-head row weight, value-head bias.
    aux = jnp.zeros((8, AUXW), jnp.float32)
    aux = aux.at[0, :hidden_dim].set(b1.reshape(-1))
    aux = aux.at[1, :hidden_dim].set(b2.reshape(-1))
    aux = aux.at[2, :hidden_dim].set(b3.reshape(-1))
    aux = aux.at[3, :_VH].set(bv1.reshape(-1))
    aux = aux.at[3, _VH:_VH + output_dim].set(ba.reshape(-1))
    aux = aux.at[4, :_VH].set(wv2.reshape(-1))          # wv2: (128,1) -> row
    aux = aux.at[5, 0].set(bv2.reshape(-1)[0])

    return {
        "w1p": w1p,
        "wrest": wrest,
        "aux": aux,
        "dims": (input_dim, hidden_dim, output_dim),
        "pads": (F_in, F_h, OUT_P, HEAD_W),
    }


# ----------------------------------------------------------------------------
# Forward pass
# ----------------------------------------------------------------------------
def dueling_dqn_forward(state, packed, *, block_batch=None,
                        single_buffer_weights=True):
    w1p, wrest, aux = packed["w1p"], packed["wrest"], packed["aux"]
    input_dim, hidden_dim, output_dim = packed["dims"]
    F_in, F_h, OUT_P, HEAD_W = packed["pads"]
    VH = _VH

    batch = state.shape[0]
    assert state.shape[1] == input_dim

    # Batch tile: multiple of 16 (bf16 sublane packing); default aims for
    # >= 2 grid steps so the "parallel" axis feeds both v7x TensorCores.
    if block_batch is not None:
        tb = _round_up(max(block_batch, 16), 16)
    else:
        tb = min(512, _round_up(max(_cdiv(batch, 2), 16), 16))
    n_tiles = _cdiv(batch, tb)
    grid = (n_tiles,)

    # Pad only the feature axis (lanes), and only when actually needed.
    # The batch axis is NOT padded: ragged last tile handled in-kernel.
    x = state.astype(jnp.float32)
    if input_dim != F_in:
        x = jnp.pad(x, ((0, 0), (0, F_in - input_dim)))

    needs_mask = (batch % tb) != 0  # static: full tiles skip the row mask

    def kernel(x_ref, w1_ref, w_ref, aux_ref, q_ref, asum_ref):
        tile = pl.program_id(0)

        # feature MLP: 3 x (Linear + ReLU); bf16 MXU dots, f32 accumulate,
        # f32 bias/ReLU.  Padded lanes stay exactly 0 throughout.
        xb = x_ref[...].astype(jnp.bfloat16)                       # (tb, F_in)
        h = jnp.maximum(
            jnp.dot(xb, w1_ref[...], preferred_element_type=jnp.float32)
            + aux_ref[0:1, 0:F_h], 0.0)
        h = jnp.maximum(
            jnp.dot(h.astype(jnp.bfloat16), w_ref[:, 0:F_h],
                    preferred_element_type=jnp.float32)
            + aux_ref[1:2, 0:F_h], 0.0)
        h = jnp.maximum(
            jnp.dot(h.astype(jnp.bfloat16), w_ref[:, F_h:2 * F_h],
                    preferred_element_type=jnp.float32)
            + aux_ref[2:3, 0:F_h], 0.0)

        # fused [value-hidden | advantage] head: one lane-dense matmul
        head = jnp.dot(h.astype(jnp.bfloat16),
                       w_ref[:, 2 * F_h:2 * F_h + HEAD_W],
                       preferred_element_type=jnp.float32) + aux_ref[3:4, 0:HEAD_W]
        vh = jnp.maximum(head[:, 0:VH], 0.0)                        # (tb, 128)
        a = head[:, VH:VH + OUT_P]                                  # padded lanes == 0

        # value head (128 -> 1): VPU multiply + XLU lane reduce (f32),
        # instead of an N=1 MXU push/drain.
        wv2_row = aux_ref[4:5, 0:VH]                                # (1, 128)
        bv2 = aux_ref[5:6, 0:1]                                     # (1, 1)
        v = jnp.sum(vh * wv2_row, axis=-1, keepdims=True) + bv2     # (tb, 1)

        # q without the global advantage mean (subtracted in the wrapper,
        # since torch's advantages.mean() spans the whole batch).
        q_ref[...] = v + a

        # Per-tile advantage partial sum.  (8,128) is the minimum VMEM tile;
        # kept per-tile-blocked so it is safe under megacore "parallel".
        def _store_sum(val):
            asum_ref[...] = jnp.broadcast_to(jnp.sum(val), (1, 8, 128))

        if not needs_mask:
            _store_sum(a)
        else:
            last = pl.num_programs(0) - 1

            @pl.when(tile < last)
            def _():
                _store_sum(a)

            @pl.when(tile == last)
            def _():
                rows = jax.lax.broadcasted_iota(jnp.int32, a.shape, 0) + tile * tb
                # where-select: garbage/NaN rows past the real batch never
                # reach the sum.
                _store_sum(jnp.where(rows < batch, a, 0.0))

    wrest_cols = wrest.shape[1]
    auxw = aux.shape[1]

    def make_in_specs(single_buffer):
        # Resident slabs (constant index_map): request single-buffering so the
        # auto-pipeline does not double their VMEM footprint.
        resident = dict(pipeline_mode=pl.Buffered(1)) if single_buffer else {}
        return [
            pl.BlockSpec((tb, F_in), lambda i: (i, 0)),                # state tile
            pl.BlockSpec((F_in, F_h), lambda i: (0, 0), **resident),   # w1 slab
            pl.BlockSpec((F_h, wrest_cols), lambda i: (0, 0), **resident),  # w2|w3|head
            pl.BlockSpec((8, auxw), lambda i: (0, 0), **resident),     # biases etc.
        ]

    out_shape = (
        jax.ShapeDtypeStruct((batch, OUT_P), jnp.float32),
        jax.ShapeDtypeStruct((n_tiles, 8, 128), jnp.float32),
    )
    out_specs = (
        pl.BlockSpec((tb, OUT_P), lambda i: (i, 0)),                   # lane-dense q
        pl.BlockSpec((1, 8, 128), lambda i: (i, 0, 0)),                # adv partial sums
    )

    # Explicit scoped-VMEM budget: resident slabs (worst case double-buffered)
    # + streamed tiles + rough activation working set, clamped to [32, 64] MiB.
    est_vmem = (
        2 * (w1p.size * w1p.dtype.itemsize + wrest.size * wrest.dtype.itemsize
             + aux.size * aux.dtype.itemsize)
        + 2 * (tb * F_in + tb * OUT_P + 8 * 128) * 4
        + 6 * tb * max(F_h, HEAD_W) * 4)
    vmem_limit = int(min(64 * 1024 * 1024, max(32 * 1024 * 1024, 2 * est_vmem)))

    def run(single_buffer):
        return pl.pallas_call(
            kernel,
            out_shape=out_shape,
            grid=grid,
            in_specs=make_in_specs(single_buffer),
            out_specs=out_specs,
            compiler_params=pltpu.CompilerParams(
                dimension_semantics=("parallel",),
                vmem_limit_bytes=vmem_limit),
        )(x, w1p, wrest, aux)

    try:
        q_pre, asum = run(single_buffer_weights)
    except Exception:
        if not single_buffer_weights:
            raise
        # Fallback: default (double-buffered) pipelining if pl.Buffered(1) is
        # not supported by this jax version.  Correctness is identical.
        q_pre, asum = run(False)

    a_mean = jnp.sum(asum[:, 0, 0]) / (batch * output_dim)
    return q_pre[:, :output_dim] - a_mean


# ----------------------------------------------------------------------------
# Parameter init + pure-JAX references
# ----------------------------------------------------------------------------
def _linear_params(key, fan_in, fan_out):
    kw, kb = jax.random.split(key)
    bound = 1.0 / np.sqrt(fan_in)
    w = jax.random.uniform(kw, (fan_in, fan_out), jnp.float32, -bound, bound)
    b = jax.random.uniform(kb, (1, fan_out), jnp.float32, -bound, bound)
    return w, b


def make_params(key, input_dim, hidden_dim, output_dim):
    keys = jax.random.split(key, 6)
    w1, b1 = _linear_params(keys[0], input_dim, hidden_dim)
    w2, b2 = _linear_params(keys[1], hidden_dim, hidden_dim)
    w3, b3 = _linear_params(keys[2], hidden_dim, hidden_dim)
    wv1, bv1 = _linear_params(keys[3], hidden_dim, 128)
    wv2, bv2 = _linear_params(keys[4], 128, 1)
    wa, ba = _linear_params(keys[5], hidden_dim, output_dim)
    return (w1, b1, w2, b2, w3, b3, wv1, bv1, wv2, bv2, wa, ba)


def reference_forward(state, params):
    # Pure f32 reference == the PyTorch module.
    (w1, b1, w2, b2, w3, b3, wv1, bv1, wv2, bv2, wa, ba) = params
    h = jax.nn.relu(state @ w1 + b1)
    h = jax.nn.relu(h @ w2 + b2)
    h = jax.nn.relu(h @ w3 + b3)
    v = jax.nn.relu(h @ wv1 + bv1) @ wv2 + bv2
    a = h @ wa + ba
    return v + (a - jnp.mean(a))   # global mean, exactly like the torch module


def reference_forward_bf16(state, params):
    # Mirrors the kernel's dtype strategy (bf16 dot inputs, f32 accumulate,
    # f32 bias/ReLU, f32 value head) for a tight correctness check.
    (w1, b1, w2, b2, w3, b3, wv1, bv1, wv2, bv2, wa, ba) = params

    def dot(x, w):
        return jnp.dot(x.astype(jnp.bfloat16), w.astype(jnp.bfloat16),
                       preferred_element_type=jnp.float32)

    x = state.astype(jnp.float32)
    h = jax.nn.relu(dot(x, w1) + b1)
    h = jax.nn.relu(dot(h, w2) + b2)
    h = jax.nn.relu(dot(h, w3) + b3)
    vh = jax.nn.relu(dot(h, wv1) + bv1)
    v = vh @ wv2 + bv2
    a = dot(h, wa) + ba
    return v + (a - jnp.mean(a))


if __name__ == "__main__":
    input_dim, hidden_dim, output_dim = 16, 32, 8

    root = jax.random.PRNGKey(0)
    k_params, k_state1, k_state2 = jax.random.split(root, 3)

    params = make_params(k_params, input_dim, hidden_dim, output_dim)
    packed = pack_params(params, input_dim, hidden_dim, output_dim)

    # Case 1: tiny batch -> single ragged tile (row mask path, grid=(1,)).
    state1 = jax.random.normal(k_state1, (4, input_dim), jnp.float32)
    q1 = jax.block_until_ready(dueling_dqn_forward(state1, packed))
    np.testing.assert_allclose(np.asarray(q1),
                               np.asarray(reference_forward_bf16(state1, params)),
                               rtol=2e-3, atol=2e-3)
    np.testing.assert_allclose(np.asarray(q1),
                               np.asarray(reference_forward(state1, params)),
                               rtol=3e-2, atol=3e-2)

    # Case 2: batch=20, tile=16 -> 2 grid steps ("parallel" axis), last tile
    # ragged (row mask) + multi-tile global advantage mean.
    state2 = jax.random.normal(k_state2, (20, input_dim), jnp.float32)
    q2 = jax.block_until_ready(dueling_dqn_forward(state2, packed, block_batch=16))
    np.testing.assert_allclose(np.asarray(q2),
                               np.asarray(reference_forward_bf16(state2, params)),
                               rtol=2e-3, atol=2e-3)
    np.testing.assert_allclose(np.asarray(q2),
                               np.asarray(reference_forward(state2, params)),
                               rtol=3e-2, atol=3e-2)

    print("KERNEL_OK")
</pallas_src>

<mosaic_0001>
module attributes {stable_mosaic.version = 11 : i64} {
  func.func @kernel(%arg0: i32, %arg1: memref<16x128xf32, #tpu.memory_space<vmem>>, %arg2: memref<128x128xbf16, #tpu.memory_space<vmem>>, %arg3: memref<128x512xbf16, #tpu.memory_space<vmem>>, %arg4: memref<8x256xf32, #tpu.memory_space<vmem>>, %arg5: memref<16x128xf32, #tpu.memory_space<vmem>>, %arg6: memref<1x8x128xf32, #tpu.memory_space<vmem>>) attributes {dimension_semantics = [#tpu.dimension_semantics<parallel>], iteration_bounds = array<i64: 1>, scalar_prefetch = 0 : i64, scratch_operands = 0 : i64, tpu.core_type = #tpu.core_type<tc>, window_params = [{transform_indices = @transform_0, window_bounds = array<i64: 16, 128>}, {pipeline_mode = #tpu.pipeline_mode<synchronous>, transform_indices = @transform_1, window_bounds = array<i64: 128, 128>}, {pipeline_mode = #tpu.pipeline_mode<synchronous>, transform_indices = @transform_2, window_bounds = array<i64: 128, 512>}, {pipeline_mode = #tpu.pipeline_mode<synchronous>, transform_indices = @transform_3, window_bounds = array<i64: 8, 256>}, {transform_indices = @transform_4, window_bounds = array<i64: 16, 128>}, {transform_indices = @transform_5, window_bounds = array<i64: 1, 8, 128>}]} {
    %c0 = arith.constant 0 : index
    %c0_0 = arith.constant 0 : index
    %0 = vector.load %arg1[%c0, %c0_0] : memref<16x128xf32, #tpu.memory_space<vmem>>, vector<16x128xf32>
    %1 = arith.truncf %0 : vector<16x128xf32> to vector<16x128xbf16>
    %c0_1 = arith.constant 0 : index
    %c0_2 = arith.constant 0 : index
    %2 = vector.load %arg2[%c0_1, %c0_2] : memref<128x128xbf16, #tpu.memory_space<vmem>>, vector<128x128xbf16>
    %cst = arith.constant dense<0.000000e+00> : vector<16x128xf32>
    %3 = tpu.matmul %1, %2, %cst {dimension_numbers = #tpu.dot_dimension_numbers<[1], [0], [0], [1], [0, 0, 1, 1], [], []>} : vector<16x128xbf16>, vector<128x128xbf16>, vector<16x128xf32> -> vector<16x128xf32>
    %c0_3 = arith.constant 0 : index
    %c0_4 = arith.constant 0 : index
    %4 = vector.load %arg4[%c0_3, %c0_4] : memref<8x256xf32, #tpu.memory_space<vmem>>, vector<1x128xf32>
    %5 = vector.broadcast %4 : vector<1x128xf32> to vector<16x128xf32>
    %6 = arith.addf %3, %5 : vector<16x128xf32>
    %cst_5 = arith.constant 0.000000e+00 : f32
    %7 = vector.broadcast %cst_5 : f32 to vector<16x128xf32>
    %8 = arith.maximumf %6, %7 : vector<16x128xf32>
    %9 = arith.truncf %8 : vector<16x128xf32> to vector<16x128xbf16>
    %c0_6 = arith.constant 0 : index
    %c0_7 = arith.constant 0 : index
    %10 = vector.load %arg3[%c0_6, %c0_7] : memref<128x512xbf16, #tpu.memory_space<vmem>>, vector<128x128xbf16>
    %cst_8 = arith.constant dense<0.000000e+00> : vector<16x128xf32>
    %11 = tpu.matmul %9, %10, %cst_8 {dimension_numbers = #tpu.dot_dimension_numbers<[1], [0], [0], [1], [0, 0, 1, 1], [], []>} : vector<16x128xbf16>, vector<128x128xbf16>, vector<16x128xf32> -> vector<16x128xf32>
    %c1 = arith.constant 1 : index
    %c0_9 = arith.constant 0 : index
    %12 = vector.load %arg4[%c1, %c0_9] : memref<8x256xf32, #tpu.memory_space<vmem>>, vector<1x128xf32>
    %13 = vector.broadcast %12 : vector<1x128xf32> to vector<16x128xf32>
    %14 = arith.addf %11, %13 : vector<16x128xf32>
    %cst_10 = arith.constant 0.000000e+00 : f32
    %15 = vector.broadcast %cst_10 : f32 to vector<16x128xf32>
    %16 = arith.maximumf %14, %15 : vector<16x128xf32>
    %17 = arith.truncf %16 : vector<16x128xf32> to vector<16x128xbf16>
    %c0_11 = arith.constant 0 : index
    %c128 = arith.constant 128 : index
    %18 = vector.load %arg3[%c0_11, %c128] : memref<128x512xbf16, #tpu.memory_space<vmem>>, vector<128x128xbf16>
    %cst_12 = arith.constant dense<0.000000e+00> : vector<16x128xf32>
    %19 = tpu.matmul %17, %18, %cst_12 {dimension_numbers = #tpu.dot_dimension_numbers<[1], [0], [0], [1], [0, 0, 1, 1], [], []>} : vector<16x128xbf16>, vector<128x128xbf16>, vector<16x128xf32> -> vector<16x128xf32>
    %c2 = arith.constant 2 : index
    %c0_13 = arith.constant 0 : index
    %20 = vector.load %arg4[%c2, %c0_13] : memref<8x256xf32, #tpu.memory_space<vmem>>, vector<1x128xf32>
    %21 = vector.broadcast %20 : vector<1x128xf32> to vector<16x128xf32>
    %22 = arith.addf %19, %21 : vector<16x128xf32>
    %cst_14 = arith.constant 0.000000e+00 : f32
    %23 = vector.broadcast %cst_14 : f32 to vector<16x128xf32>
    %24 = arith.maximumf %22, %23 : vector<16x128xf32>
    %25 = arith.truncf %24 : vector<16x128xf32> to vector<16x128xbf16>
    %c0_15 = arith.constant 0 : index
    %c256 = arith.constant 256 : index
    %26 = vector.load %arg3[%c0_15, %c256] : memref<128x512xbf16, #tpu.memory_space<vmem>>, vector<128x256xbf16>
    %cst_16 = arith.constant dense<0.000000e+00> : vector<16x256xf32>
    %27 = tpu.matmul %25, %26, %cst_16 {dimension_numbers = #tpu.dot_dimension_numbers<[1], [0], [0], [1], [0, 0, 1, 1], [], []>} : vector<16x128xbf16>, vector<128x256xbf16>, vector<16x256xf32> -> vector<16x256xf32>
    %c3 = arith.constant 3 : index
    %c0_17 = arith.constant 0 : index
    %28 = vector.load %arg4[%c3, %c0_17] : memref<8x256xf32, #tpu.memory_space<vmem>>, vector<1x256xf32>
    %29 = vector.broadcast %28 : vector<1x256xf32> to vector<16x256xf32>
    %30 = arith.addf %27, %29 : vector<16x256xf32>
    %31 = vector.extract_strided_slice %30 {offsets = [0, 0], sizes = [16, 128], strides = [1, 1]} : vector<16x256xf32> to vector<16x128xf32>
    %cst_18 = arith.constant 0.000000e+00 : f32
    %32 = vector.broadcast %cst_18 : f32 to vector<16x128xf32>
    %33 = arith.maximumf %31, %32 : vector<16x128xf32>
    %34 = vector.extract_strided_slice %30 {offsets = [0, 128], sizes = [16, 128], strides = [1, 1]} : vector<16x256xf32> to vector<16x128xf32>
    %c4 = arith.constant 4 : index
    %c0_19 = arith.constant 0 : index
    %35 = vector.load %arg4[%c4, %c0_19] : memref<8x256xf32, #tpu.memory_space<vmem>>, vector<1x128xf32>
    %c5 = arith.constant 5 : index
    %c0_20 = arith.constant 0 : index
    %36 = vector.load %arg4[%c5, %c0_20] : memref<8x256xf32, #tpu.memory_space<vmem>>, vector<1x1xf32>
    %37 = vector.broadcast %35 : vector<1x128xf32> to vector<16x128xf32>
    %38 = arith.mulf %33, %37 : vector<16x128xf32>
    %cst_21 = arith.constant dense<0.000000e+00> : vector<16xf32>
    %39 = vector.multi_reduction <add>, %38, %cst_21 [1] : vector<16x128xf32> to vector<16xf32>
    %40 = vector.shape_cast %39 : vector<16xf32> to vector<16x1xf32>
    %41 = vector.broadcast %36 : vector<1x1xf32> to vector<16x1xf32>
    %42 = arith.addf %40, %41 : vector<16x1xf32>
    %43 = vector.broadcast %42 : vector<16x1xf32> to vector<16x128xf32>
    %44 = arith.addf %43, %34 : vector<16x128xf32>
    %c0_22 = arith.constant 0 : index
    %c0_23 = arith.constant 0 : index
    %45 = vector.load %arg5[%c0_22, %c0_23] : memref<16x128xf32, #tpu.memory_space<vmem>>, vector<16x128xf32>
    tpu.vector_store %arg5[%c0_22, %c0_23], %44 {strides = array<i32>} : memref<16x128xf32, #tpu.memory_space<vmem>>, vector<16x128xf32>,
    %c0_i32 = arith.constant 0 : i32
    %46 = arith.cmpi slt, %arg0, %c0_i32 : i32
    %47 = arith.extui %46 : i1 to i32
    %c0_i32_24 = arith.constant 0 : i32
    %48 = arith.cmpi ne, %47, %c0_i32_24 : i32
    scf.if %48 {
      %52 = vector.shape_cast %34 : vector<16x128xf32> to vector<1x16x128xf32>
      %cst_27 = arith.constant dense<0.000000e+00> : vector<1xf32>
      %53 = vector.multi_reduction <add>, %52, %cst_27 [1, 2] : vector<1x16x128xf32> to vector<1xf32>
      %54 = vector.shape_cast %53 : vector<1xf32> to vector<1x1x1xf32>
      %55 = vector.extract %54[0, 0, 0] : f32 from vector<1x1x1xf32>
      %56 = vector.broadcast %55 : f32 to vector<1x8x128xf32>
      %c0_28 = arith.constant 0 : index
      %c0_29 = arith.constant 0 : index
      %c0_30 = arith.constant 0 : index
      %57 = vector.load %arg6[%c0_28, %c0_29, %c0_30] : memref<1x8x128xf32, #tpu.memory_space<vmem>>, vector<1x8x128xf32>
      tpu.vector_store %arg6[%c0_28, %c0_29, %c0_30], %56 {strides = array<i32>} : memref<1x8x128xf32, #tpu.memory_space<vmem>>, vector<1x8x128xf32>,
    } else {
    }
    %c0_i32_25 = arith.constant 0 : i32
    %49 = arith.cmpi eq, %arg0, %c0_i32_25 : i32
    %50 = arith.extui %49 : i1 to i32
    %c0_i32_26 = arith.constant 0 : i32
    %51 = arith.cmpi ne, %50, %c0_i32_26 : i32
    scf.if %51 {
      %52 = tpu.iota {dimensions = array<i32: 0>} : vector<16x128xi32>
      %c16_i32 = arith.constant 16 : i32
      %53 = arith.muli %arg0, %c16_i32 : i32
      %54 = vector.broadcast %53 : i32 to vector<16x128xi32>
      %55 = arith.addi %52, %54 : vector<16x128xi32>
      %c4_i32 = arith.constant 4 : i32
      %56 = vector.broadcast %c4_i32 : i32 to vector<16x128xi32>
      %57 = arith.cmpi slt, %55, %56 : vector<16x128xi32>
      %cst_27 = arith.constant 0.000000e+00 : f32
      %58 = vector.broadcast %cst_27 : f32 to vector<16x128xf32>
      %59 = arith.select %57, %34, %58 : vector<16x128xi1>, vector<16x128xf32>
      %60 = vector.shape_cast %59 : vector<16x128xf32> to vector<1x16x128xf32>
      %cst_28 = arith.constant dense<0.000000e+00> : vector<1xf32>
      %61 = vector.multi_reduction <add>, %60, %cst_28 [1, 2] : vector<1x16x128xf32> to vector<1xf32>
      %62 = vector.shape_cast %61 : vector<1xf32> to vector<1x1x1xf32>
      %63 = vector.extract %62[0, 0, 0] : f32 from vector<1x1x1xf32>
      %64 = vector.broadcast %63 : f32 to vector<1x8x128xf32>
      %c0_29 = arith.constant 0 : index
      %c0_30 = arith.constant 0 : index
      %c0_31 = arith.constant 0 : index
      %65 = vector.load %arg6[%c0_29, %c0_30, %c0_31] : memref<1x8x128xf32, #tpu.memory_space<vmem>>, vector<1x8x128xf32>
      tpu.vector_store %arg6[%c0_29, %c0_30, %c0_31], %64 {strides = array<i32>} : memref<1x8x128xf32, #tpu.memory_space<vmem>>, vector<1x8x128xf32>,
    } else {
    }
    return
  }
  func.func @transform_0(%arg0: i32) -> (i32, i32) {
    %c0_i32 = arith.constant 0 : i32
    %c0_i32_0 = arith.constant 0 : i32
    return %arg0, %c0_i32 : i32, i32
  }
  func.func @transform_1(%arg0: i32) -> (i32, i32) {
    %c0_i32 = arith.constant 0 : i32
    %c0_i32_0 = arith.constant 0 : i32
    %c0_i32_1 = arith.constant 0 : i32
    return %c0_i32, %c0_i32_0 : i32, i32
  }
  func.func @transform_2(%arg0: i32) -> (i32, i32) {
    %c0_i32 = arith.constant 0 : i32
    %c0_i32_0 = arith.constant 0 : i32
    %c0_i32_1 = arith.constant 0 : i32
    return %c0_i32, %c0_i32_0 : i32, i32
  }
  func.func @transform_3(%arg0: i32) -> (i32, i32) {
    %c0_i32 = arith.constant 0 : i32
    %c0_i32_0 = arith.constant 0 : i32
    %c0_i32_1 = arith.constant 0 : i32
    return %c0_i32, %c0_i32_0 : i32, i32
  }
  func.func @transform_4(%arg0: i32) -> (i32, i32) {
    %c0_i32 = arith.constant 0 : i32
    %c0_i32_0 = arith.constant 0 : i32
    return %arg0, %c0_i32 : i32, i32
  }
  func.func @transform_5(%arg0: i32) -> (i32, i32, i32) {
    %c0_i32 = arith.constant 0 : i32
    %c0_i32_0 = arith.constant 0 : i32
    %c0_i32_1 = arith.constant 0 : i32
    return %arg0, %c0_i32, %c0_i32_0 : i32, i32, i32
  }
}

module attributes {stable_mosaic.version = 11 : i64} {
  func.func @kernel(%arg0: i32, %arg1: memref<16x128xf32, #tpu.memory_space<vmem>>, %arg2: memref<128x128xbf16, #tpu.memory_space<vmem>>, %arg3: memref<128x512xbf16, #tpu.memory_space<vmem>>, %arg4: memref<8x256xf32, #tpu.memory_space<vmem>>, %arg5: memref<16x128xf32, #tpu.memory_space<vmem>>, %arg6: memref<1x8x128xf32, #tpu.memory_space<vmem>>) attributes {dimension_semantics = [#tpu.dimension_semantics<parallel>], iteration_bounds = array<i64: 1>, scalar_prefetch = 0 : i64, scratch_operands = 0 : i64, tpu.core_type = #tpu.core_type<tc>, window_params = [{transform_indices = @transform_0, window_bounds = array<i64: 16, 128>}, {pipeline_mode = #tpu.pipeline_mode<synchronous>, transform_indices = @transform_1, window_bounds = array<i64: 128, 128>}, {pipeline_mode = #tpu.pipeline_mode<synchronous>, transform_indices = @transform_2, window_bounds = array<i64: 128, 512>}, {pipeline_mode = #tpu.pipeline_mode<synchronous>, transform_indices = @transform_3, window_bounds = array<i64: 8, 256>}, {transform_indices = @transform_4, window_bounds = array<i64: 16, 128>}, {transform_indices = @transform_5, window_bounds = array<i64: 1, 8, 128>}]} {
    %c0 = arith.constant 0 : index
    %c0_0 = arith.constant 0 : index
    %0 = vector.load %arg1[%c0, %c0_0] : memref<16x128xf32, #tpu.memory_space<vmem>>, vector<16x128xf32>
    %1 = arith.truncf %0 : vector<16x128xf32> to vector<16x128xbf16>
    %c0_1 = arith.constant 0 : index
    %c0_2 = arith.constant 0 : index
    %2 = vector.load %arg2[%c0_1, %c0_2] : memref<128x128xbf16, #tpu.memory_space<vmem>>, vector<128x128xbf16>
    %cst = arith.constant dense<0.000000e+00> : vector<16x128xf32>
    %3 = tpu.matmul %1, %2, %cst {dimension_numbers = #tpu.dot_dimension_numbers<[1], [0], [0], [1], [0, 0, 1, 1], [], []>} : vector<16x128xbf16>, vector<128x128xbf16>, vector<16x128xf32> -> vector<16x128xf32>
    %c0_3 = arith.constant 0 : index
    %c0_4 = arith.constant 0 : index
    %4 = vector.load %arg4[%c0_3, %c0_4] : memref<8x256xf32, #tpu.memory_space<vmem>>, vector<1x128xf32>
    %5 = vector.broadcast %4 : vector<1x128xf32> to vector<16x128xf32>
    %6 = arith.addf %3, %5 : vector<16x128xf32>
    %cst_5 = arith.constant 0.000000e+00 : f32
    %7 = vector.broadcast %cst_5 : f32 to vector<16x128xf32>
    %8 = arith.maximumf %6, %7 : vector<16x128xf32>
    %9 = arith.truncf %8 : vector<16x128xf32> to vector<16x128xbf16>
    %c0_6 = arith.constant 0 : index
    %c0_7 = arith.constant 0 : index
    %10 = vector.load %arg3[%c0_6, %c0_7] : memref<128x512xbf16, #tpu.memory_space<vmem>>, vector<128x128xbf16>
    %cst_8 = arith.constant dense<0.000000e+00> : vector<16x128xf32>
    %11 = tpu.matmul %9, %10, %cst_8 {dimension_numbers = #tpu.dot_dimension_numbers<[1], [0], [0], [1], [0, 0, 1, 1], [], []>} : vector<16x128xbf16>, vector<128x128xbf16>, vector<16x128xf32> -> vector<16x128xf32>
    %c1 = arith.constant 1 : index
    %c0_9 = arith.constant 0 : index
    %12 = vector.load %arg4[%c1, %c0_9] : memref<8x256xf32, #tpu.memory_space<vmem>>, vector<1x128xf32>
    %13 = vector.broadcast %12 : vector<1x128xf32> to vector<16x128xf32>
    %14 = arith.addf %11, %13 : vector<16x128xf32>
    %cst_10 = arith.constant 0.000000e+00 : f32
    %15 = vector.broadcast %cst_10 : f32 to vector<16x128xf32>
    %16 = arith.maximumf %14, %15 : vector<16x128xf32>
    %17 = arith.truncf %16 : vector<16x128xf32> to vector<16x128xbf16>
    %c0_11 = arith.constant 0 : index
    %c128 = arith.constant 128 : index
    %18 = vector.load %arg3[%c0_11, %c128] : memref<128x512xbf16, #tpu.memory_space<vmem>>, vector<128x128xbf16>
    %cst_12 = arith.constant dense<0.000000e+00> : vector<16x128xf32>
    %19 = tpu.matmul %17, %18, %cst_12 {dimension_numbers = #tpu.dot_dimension_numbers<[1], [0], [0], [1], [0, 0, 1, 1], [], []>} : vector<16x128xbf16>, vector<128x128xbf16>, vector<16x128xf32> -> vector<16x128xf32>
    %c2 = arith.constant 2 : index
    %c0_13 = arith.constant 0 : index
    %20 = vector.load %arg4[%c2, %c0_13] : memref<8x256xf32, #tpu.memory_space<vmem>>, vector<1x128xf32>
    %21 = vector.broadcast %20 : vector<1x128xf32> to vector<16x128xf32>
    %22 = arith.addf %19, %21 : vector<16x128xf32>
    %cst_14 = arith.constant 0.000000e+00 : f32
    %23 = vector.broadcast %cst_14 : f32 to vector<16x128xf32>
    %24 = arith.maximumf %22, %23 : vector<16x128xf32>
    %25 = arith.truncf %24 : vector<16x128xf32> to vector<16x128xbf16>
    %c0_15 = arith.constant 0 : index
    %c256 = arith.constant 256 : index
    %26 = vector.load %arg3[%c0_15, %c256] : memref<128x512xbf16, #tpu.memory_space<vmem>>, vector<128x256xbf16>
    %cst_16 = arith.constant dense<0.000000e+00> : vector<16x256xf32>
    %27 = tpu.matmul %25, %26, %cst_16 {dimension_numbers = #tpu.dot_dimension_numbers<[1], [0], [0], [1], [0, 0, 1, 1], [], []>} : vector<16x128xbf16>, vector<128x256xbf16>, vector<16x256xf32> -> vector<16x256xf32>
    %c3 = arith.constant 3 : index
    %c0_17 = arith.constant 0 : index
    %28 = vector.load %arg4[%c3, %c0_17] : memref<8x256xf32, #tpu.memory_space<vmem>>, vector<1x256xf32>
    %29 = vector.broadcast %28 : vector<1x256xf32> to vector<16x256xf32>
    %30 = arith.addf %27, %29 : vector<16x256xf32>
    %31 = vector.extract_strided_slice %30 {offsets = [0, 0], sizes = [16, 128], strides = [1, 1]} : vector<16x256xf32> to vector<16x128xf32>
    %cst_18 = arith.constant 0.000000e+00 : f32
    %32 = vector.broadcast %cst_18 : f32 to vector<16x128xf32>
    %33 = arith.maximumf %31, %32 : vector<16x128xf32>
    %34 = vector.extract_strided_slice %30 {offsets = [0, 128], sizes = [16, 128], strides = [1, 1]} : vector<16x256xf32> to vector<16x128xf32>
    %c4 = arith.constant 4 : index
    %c0_19 = arith.constant 0 : index
    %35 = vector.load %arg4[%c4, %c0_19] : memref<8x256xf32, #tpu.memory_space<vmem>>, vector<1x128xf32>
    %c5 = arith.constant 5 : index
    %c0_20 = arith.constant 0 : index
    %36 = vector.load %arg4[%c5, %c0_20] : memref<8x256xf32, #tpu.memory_space<vmem>>, vector<1x1xf32>
    %37 = vector.broadcast %35 : vector<1x128xf32> to vector<16x128xf32>
    %38 = arith.mulf %33, %37 : vector<16x128xf32>
    %cst_21 = arith.constant dense<0.000000e+00> : vector<16xf32>
    %39 = vector.multi_reduction <add>, %38, %cst_21 [1] : vector<16x128xf32> to vector<16xf32>
    %40 = vector.shape_cast %39 : vector<16xf32> to vector<16x1xf32>
    %41 = vector.broadcast %36 : vector<1x1xf32> to vector<16x1xf32>
    %42 = arith.addf %40, %41 : vector<16x1xf32>
    %43 = vector.broadcast %42 : vector<16x1xf32> to vector<16x128xf32>
    %44 = arith.addf %43, %34 : vector<16x128xf32>
    %c0_22 = arith.constant 0 : index
    %c0_23 = arith.constant 0 : index
    %45 = vector.load %arg5[%c0_22, %c0_23] : memref<16x128xf32, #tpu.memory_space<vmem>>, vector<16x128xf32>
    tpu.vector_store %arg5[%c0_22, %c0_23], %44 {strides = array<i32>} : memref<16x128xf32, #tpu.memory_space<vmem>>, vector<16x128xf32>,
    %c0_i32 = arith.constant 0 : i32
    %46 = arith.cmpi slt, %arg0, %c0_i32 : i32
    %47 = arith.extui %46 : i1 to i32
    %c0_i32_24 = arith.constant 0 : i32
    %48 = arith.cmpi ne, %47, %c0_i32_24 : i32
    scf.if %48 {
      %52 = vector.shape_cast %34 : vector<16x128xf32> to vector<1x16x128xf32>
      %cst_27 = arith.constant dense<0.000000e+00> : vector<1xf32>
      %53 = vector.multi_reduction <add>, %52, %cst_27 [1, 2] : vector<1x16x128xf32> to vector<1xf32>
      %54 = vector.shape_cast %53 : vector<1xf32> to vector<1x1x1xf32>
      %55 = vector.extract %54[0, 0, 0] : f32 from vector<1x1x1xf32>
      %56 = vector.broadcast %55 : f32 to vector<1x8x128xf32>
      %c0_28 = arith.constant 0 : index
      %c0_29 = arith.constant 0 : index
      %c0_30 = arith.constant 0 : index
      %57 = vector.load %arg6[%c0_28, %c0_29, %c0_30] : memref<1x8x128xf32, #tpu.memory_space<vmem>>, vector<1x8x128xf32>
      tpu.vector_store %arg6[%c0_28, %c0_29, %c0_30], %56 {strides = array<i32>} : memref<1x8x128xf32, #tpu.memory_space<vmem>>, vector<1x8x128xf32>,
    } else {
    }
    %c0_i32_25 = arith.constant 0 : i32
    %49 = arith.cmpi eq, %arg0, %c0_i32_25 : i32
    %50 = arith.extui %49 : i1 to i32
    %c0_i32_26 = arith.constant 0 : i32
    %51 = arith.cmpi ne, %50, %c0_i32_26 : i32
    scf.if %51 {
      %52 = tpu.iota {dimensions = array<i32: 0>} : vector<16x128xi32>
      %c16_i32 = arith.constant 16 : i32
      %53 = arith.muli %arg0, %c16_i32 : i32
      %54 = vector.broadcast %53 : i32 to vector<16x128xi32>
      %55 = arith.addi %52, %54 : vector<16x128xi32>
      %c4_i32 = arith.constant 4 : i32
      %56 = vector.broadcast %c4_i32 : i32 to vector<16x128xi32>
      %57 = arith.cmpi slt, %55, %56 : vector<16x128xi32>
      %cst_27 = arith.constant 0.000000e+00 : f32
      %58 = vector.broadcast %cst_27 : f32 to vector<16x128xf32>
      %59 = arith.select %57, %34, %58 : vector<16x128xi1>, vector<16x128xf32>
      %60 = vector.shape_cast %59 : vector<16x128xf32> to vector<1x16x128xf32>
      %cst_28 = arith.constant dense<0.000000e+00> : vector<1xf32>
      %61 = vector.multi_reduction <add>, %60, %cst_28 [1, 2] : vector<1x16x128xf32> to vector<1xf32>
      %62 = vector.shape_cast %61 : vector<1xf32> to vector<1x1x1xf32>
      %63 = vector.extract %62[0, 0, 0] : f32 from vector<1x1x1xf32>
      %64 = vector.broadcast %63 : f32 to vector<1x8x128xf32>
      %c0_29 = arith.constant 0 : index
      %c0_30 = arith.constant 0 : index
      %c0_31 = arith.constant 0 : index
      %65 = vector.load %arg6[%c0_29, %c0_30, %c0_31] : memref<1x8x128xf32, #tpu.memory_space<vmem>>, vector<1x8x128xf32>
      tpu.vector_store %arg6[%c0_29, %c0_30, %c0_31], %64 {strides = array<i32>} : memref<1x8x128xf32, #tpu.memory_space<vmem>>, vector<1x8x128xf32>,
    } else {
    }
    return
  }
  func.func @transform_0(%arg0: i32) -> (i32, i32) {
    %c0_i32 = arith.constant 0 : i32
    %c0_i32_0 = arith.constant 0 : i32
    return %arg0, %c0_i32 : i32, i32
  }
  func.func @transform_1(%arg0: i32) -> (i32, i32) {
    %c0_i32 = arith.constant 0 : i32
    %c0_i32_0 = arith.constant 0 : i32
    %c0_i32_1 = arith.constant 0 : i32
    return %c0_i32, %c0_i32_0 : i32, i32
  }
  func.func @transform_2(%arg0: i32) -> (i32, i32) {
    %c0_i32 = arith.constant 0 : i32
    %c0_i32_0 = arith.constant 0 : i32
    %c0_i32_1 = arith.constant 0 : i32
    return %c0_i32, %c0_i32_0 : i32, i32
  }
  func.func @transform_3(%arg0: i32) -> (i32, i32) {
    %c0_i32 = arith.constant 0 : i32
    %c0_i32_0 = arith.constant 0 : i32
    %c0_i32_1 = arith.constant 0 : i32
    return %c0_i32, %c0_i32_0 : i32, i32
  }
  func.func @transform_4(%arg0: i32) -> (i32, i32) {
    %c0_i32 = arith.constant 0 : i32
    %c0_i32_0 = arith.constant 0 : i32
    return %arg0, %c0_i32 : i32, i32
  }
  func.func @transform_5(%arg0: i32) -> (i32, i32, i32) {
    %c0_i32 = arith.constant 0 : i32
    %c0_i32_0 = arith.constant 0 : i32
    %c0_i32_1 = arith.constant 0 : i32
    return %arg0, %c0_i32, %c0_i32_0 : i32, i32, i32
  }
}

</mosaic_0001>

<llo_original>
// kernel: tpu_custom_call.1
$region0: #{tpu_custom_call.1}
  #allocation0 [shape = 'u32[]', space=smem, size = 0x4, offset = 0x4, fixed_abs, tag = 'smem constant byte address 0x4 - core index']
  #allocation1 [shape = 'u32[144,128]{1,0:T(1,128)}', space=vmem, size = 0x12000, scoped, tag = 'internal scratch']
  %s0 = inlined_call_operand.hbm [shape: f32[4,128], index: 0, kind: input, shape index: {}]
  %s1 = inlined_call_operand.hbm [shape: bf16[128,128], index: 1, kind: input, shape index: {}]
  %s2 = inlined_call_operand.hbm [shape: bf16[128,512], index: 2, kind: input, shape index: {}]
  %s3 = inlined_call_operand.hbm [shape: f32[8,256], index: 3, kind: input, shape index: {}]
  %s4 = inlined_call_operand.hbm [shape: f32[4,128], index: 4, kind: output, shape index: {0}]
  %s5 = inlined_call_operand.hbm [shape: f32[1,8,128], index: 5, kind: output, shape index: {1}]
  %6 = xla_tuple %s4, %s5
  %s7 = sld [smem:[#allocation0]]
  $region58: #{tpu_custom_call.1} parent=0
    _
  %s9 = ssub.s32 1, %s7
  %s10 = scalar_select 0, %s9, %s7
  $region1: #{tpu_custom_call.1} parent=0
    #allocation2 [shape = 'u8[8192]{0}', space=vmem, size = 0x2000, scoped, tag = 'input window, operand 0, single buffered']
    #allocation3 [shape = 's32[1]{0}', space=sflag, size = 0x4, scoped, tag = 'scoped memory for tpu_custom_call.1']
    #allocation4 [shape = 's32[1]{0}', space=sflag, size = 0x4, scoped, tag = 'scoped memory for tpu_custom_call.1']
    #allocation5 [shape = 'u8[32768]{0}', space=vmem, size = 0x8000, scoped, tag = 'input window, operand 1, single buffered']
    #allocation6 [shape = 's32[1]{0}', space=sflag, size = 0x4, scoped, tag = 'scoped memory for tpu_custom_call.1']
    #allocation7 [shape = 'u8[131072]{0}', space=vmem, size = 0x20000, scoped, tag = 'input window, operand 2, single buffered']
    #allocation8 [shape = 'u8[8192]{0}', space=vmem, size = 0x2000, scoped, tag = 'input window, operand 3, single buffered']
    #allocation9 [shape = 's32[1]{0}', space=sflag, size = 0x4, scoped, tag = 'scoped memory for tpu_custom_call.1']
    #allocation10 [shape = 'u8[8192]{0}', space=vmem, size = 0x2000, scoped, tag = 'output window, operand 0, single buffered']
    #allocation11 [shape = 'u8[4096]{0}', space=vmem, size = 0x1000, scoped, tag = 'output window, operand 1, single buffered']
    #allocation12 [shape = 's32[1]{0}', space=sflag, size = 0x4, scoped, tag = 'scoped memory for tpu_custom_call.1']
    %11 = vsyncpa [#allocation3], 0
    %12 = vsyncpa [#allocation6], 0
    %13 = vsyncpa [#allocation9], 0
    %14 = vsyncpa [#allocation4], 0
    %15 = vsyncpa [#allocation12], 0
    // Predicated region
    $region2: #{tpu_custom_call.1} parent=1 // pred_check
      _
    $region3: #{tpu_custom_call.1} parent=1 // pred_check_branch
      %17 = sbr.rel (0) target = $region5
    $region4: #{tpu_custom_call.1} parent=1 // pred_region
      %s19 = ssub.s32 256, 64
      %20 = vsyncadd [#allocation3], %s19
      %s21 = sshll.u32 [#allocation2], 4
      %s22 = int_to_ptr.vmem [resolvable:$true] %s21
      %27 = dma.hbm_to_vmem [thread:$0]  %s0, 64, %s22, [#allocation3], 64, 64, 4
    $region5: #{tpu_custom_call.1} parent=1 // pred_fallthru
      _
    // Predicated region
    $region6: #{tpu_custom_call.1} parent=1 // pred_check
      _
    $region7: #{tpu_custom_call.1} parent=1 // pred_check_branch
      %29 = sbr.rel (0) target = $region9
    $region8: #{tpu_custom_call.1} parent=1 // pred_region
      %s31 = ssub.s32 1024, 1024
      %32 = vsyncadd [#allocation6], %s31
      %s33 = sshll.u32 [#allocation5], 4
      %s34 = int_to_ptr.vmem [resolvable:$true] %s33
      %39 = dma.hbm_to_vmem [thread:$0]  %s1, 1024, %s34, [#allocation6], 64, 64, 4
    $region9: #{tpu_custom_call.1} parent=1 // pred_fallthru
      _
    // Predicated region
    $region10: #{tpu_custom_call.1} parent=1 // pred_check
      _
    $region11: #{tpu_custom_call.1} parent=1 // pred_check_branch
      %41 = sbr.rel (0) target = $region13
    $region12: #{tpu_custom_call.1} parent=1 // pred_region
      %s43 = ssub.s32 4096, 4096
      %44 = vsyncadd [#allocation6], %s43
      %s45 = sshll.u32 [#allocation7], 4
      %s46 = int_to_ptr.vmem [resolvable:$true] %s45
      %51 = dma.hbm_to_vmem [thread:$0]  %s2, 4096, %s46, [#allocation6], 256, 256, 16
    $region13: #{tpu_custom_call.1} parent=1 // pred_fallthru
      _
    // Predicated region
    $region14: #{tpu_custom_call.1} parent=1 // pred_check
      _
    $region15: #{tpu_custom_call.1} parent=1 // pred_check_branch
      %53 = sbr.rel (0) target = $region17
    $region16: #{tpu_custom_call.1} parent=1 // pred_region
      %s55 = ssub.s32 256, 256
      %56 = vsyncadd [#allocation9], %s55
      %s58 = sshll.u32 [#allocation8], 4
      %s59 = int_to_ptr.vmem [resolvable:$true] %s58
      %61 = dma.hbm_to_vmem [thread:$0]  %s3, 256, %s59, [#allocation9]
    $region17: #{tpu_custom_call.1} parent=1 // pred_fallthru
      _
    // Predicated region
    $region18: #{tpu_custom_call.1} parent=1 // pred_check
      _
    $region19: #{tpu_custom_call.1} parent=1 // pred_check_branch
      %63 = sbr.rel (0) target = $region21
    $region20: #{tpu_custom_call.1} parent=1 // pred_region
      %64 = dma.done [#allocation3], 256
    $region21: #{tpu_custom_call.1} parent=1 // pred_fallthru
      _
    // Predicated region
    $region22: #{tpu_custom_call.1} parent=1 // pred_check
      _
    $region23: #{tpu_custom_call.1} parent=1 // pred_check_branch
      %66 = sbr.rel (0) target = $region25
    $region24: #{tpu_custom_call.1} parent=1 // pred_region
      %67 = dma.done [#allocation6], 1024
    $region25: #{tpu_custom_call.1} parent=1 // pred_fallthru
      _
    // Predicated region
    $region26: #{tpu_custom_call.1} parent=1 // pred_check
      _
    $region27: #{tpu_custom_call.1} parent=1 // pred_check_branch
      %69 = sbr.rel (0) target = $region29
    $region28: #{tpu_custom_call.1} parent=1 // pred_region
      %70 = dma.done [#allocation6], 4096
    $region29: #{tpu_custom_call.1} parent=1 // pred_fallthru
      _
    // Predicated region
    $region30: #{tpu_custom_call.1} parent=1 // pred_check
      _
    $region31: #{tpu_custom_call.1} parent=1 // pred_check_branch
      %72 = sbr.rel (0) target = $region33
    $region32: #{tpu_custom_call.1} parent=1 // pred_region
      %73 = dma.done [#allocation9], 256
    $region33: #{tpu_custom_call.1} parent=1 // pred_fallthru
      _
    %v75 = vld [vmem:[#allocation2] sm:$0xff]
    %v76 = vld [vmem:[#allocation2 + $0x8] sm:$0xff]
    %v77 = vpack.c.bf16 %v76, %v75
    %v78 = vld [vmem:[#allocation5] sm:$0xf]
    %v79 = vld [vmem:[#allocation5 + $0x4] sm:$0xf]
    %v80 = vld [vmem:[#allocation5 + $0x8] sm:$0xf]
    %v81 = vld [vmem:[#allocation5 + $0xc] sm:$0xf]
    %v82 = vld [vmem:[#allocation5 + $0x10] sm:$0xf]
    %v83 = vld [vmem:[#allocation5 + $0x14] sm:$0xf]
    %v84 = vld [vmem:[#allocation5 + $0x18] sm:$0xf]
    %v85 = vld [vmem:[#allocation5 + $0x1c] sm:$0xf]
    %v86 = vld [vmem:[#allocation5 + $0x20] sm:$0xf]
    %v87 = vld [vmem:[#allocation5 + $0x24] sm:$0xf]
    %v88 = vld [vmem:[#allocation5 + $0x28] sm:$0xf]
    %v89 = vld [vmem:[#allocation5 + $0x2c] sm:$0xf]
    %v90 = vld [vmem:[#allocation5 + $0x30] sm:$0xf]
    %v91 = vld [vmem:[#allocation5 + $0x34] sm:$0xf]
    %v92 = vld [vmem:[#allocation5 + $0x38] sm:$0xf]
    %v93 = vld [vmem:[#allocation5 + $0x3c] sm:$0xf]
    %v94 = vld [vmem:[#allocation8] ss:$0 sm:$0xff]
    %v111 = vunpack.c.l.b16 %v78
    %v112 = vunpack.c.l.b16 %v79
    %v113 = vunpack.c.l.b16 %v80
    %v114 = vunpack.c.l.b16 %v81
    %v115 = vunpack.c.l.b16 %v82
    %v116 = vunpack.c.l.b16 %v83
    %v117 = vunpack.c.l.b16 %v84
    %v118 = vunpack.c.l.b16 %v85
    %v119 = vunpack.c.l.b16 %v86
    %v120 = vunpack.c.l.b16 %v87
    %v121 = vunpack.c.l.b16 %v88
    %v122 = vunpack.c.l.b16 %v89
    %v123 = vunpack.c.l.b16 %v90
    %v124 = vunpack.c.l.b16 %v91
    %v125 = vunpack.c.l.b16 %v92
    %v126 = vunpack.c.l.b16 %v93
    %v127 = vpack.c.b16 %v112, %v111
    %v128 = vpack.c.b16 %v114, %v113
    %v129 = vpack.c.b16 %v116, %v115
    %v130 = vpack.c.b16 %v118, %v117
    %v131 = vpack.c.b16 %v120, %v119
    %v132 = vpack.c.b16 %v122, %v121
    %v133 = vpack.c.b16 %v124, %v123
    %v134 = vpack.c.b16 %v126, %v125
    %143 = vmatprep.subr.bf16.mxu0 0
    %144 = vmatpush1.bf16.msra.mxu0 %v134
    %145 = vmatprep.subr.bf16.mxu0 0
    %146 = vmatpush1.bf16.msra.mxu0 %v133
    %147 = vmatprep.subr.bf16.mxu0 0
    %148 = vmatpush1.bf16.msra.mxu0 %v132
    %149 = vmatprep.subr.bf16.mxu0 0
    %150 = vmatpush1.bf16.msra.mxu0 %v131
    %151 = vmatprep.subr.bf16.mxu0 0
    %152 = vmatpush1.bf16.msra.mxu0 %v130
    %153 = vmatprep.subr.bf16.mxu0 0
    %154 = vmatpush1.bf16.msra.mxu0 %v129
    %155 = vmatprep.subr.bf16.mxu0 0
    %156 = vmatpush1.bf16.msra.mxu0 %v128
    %157 = vmatprep.subr.bf16.mxu0 0
    %158 = vmatpush1.bf16.msra.mxu0 %v127
    %159 = vmatprep.subr.bf16.mxu0 0
    %160 = vmatpush2.bf16.msra.mxu0 0
    %161 = vmatprep.subr.bf16.mxu0 0
    %162 = vmatpush2.bf16.msra.mxu0 0
    %163 = vmatprep.subr.bf16.mxu0 0
    %164 = vmatpush2.bf16.msra.mxu0 0
    %165 = vmatprep.subr.bf16.mxu0 0
    %166 = vmatpush2.bf16.msra.mxu0 0
    %167 = vmatprep.subr.bf16.mxu0 0
    %168 = vmatpush2.bf16.msra.mxu0 0
    %169 = vmatprep.subr.bf16.mxu0 0
    %170 = vmatpush2.bf16.msra.mxu0 0
    %171 = vmatprep.subr.bf16.mxu0 0
    %172 = vmatpush2.bf16.msra.mxu0 0
    %173 = vmatprep.subr.bf16.mxu0 0
    %174 = vmatpush2.bf16.msra.mxu0 0
    %175 = vmatprep.mubr.bf16.mxu0 0
    %176 = vmatmul.mubr.bf16.gmra.mxu0 %v77
    %v177 = vpop.f32.mrf.mxu0
    %v178 = vadd.f32 %v94, %v177
    %v179 = vpop.f32.mrf.mxu0
    %v180 = vpop.f32.mrf.mxu0
    %v181 = vadd.f32 %v94, %v180
    %v182 = vpop.f32.mrf.mxu0
    %183 = vdwg.mxu0
    %v184 = vmax.f32 %v178, 0.0
    %v185 = vmax.f32 %v181, 0.0
    %v186 = vpack.c.bf16 %v185, %v184
    %v187 = vld [vmem:[#allocation7] sm:$0xf]
    %v188 = vld [vmem:[#allocation7 + $0x10] sm:$0xf]
    %v189 = vld [vmem:[#allocation7 + $0x20] sm:$0xf]
    %v190 = vld [vmem:[#allocation7 + $0x30] sm:$0xf]
    %v191 = vld [vmem:[#allocation7 + $0x40] sm:$0xf]
    %v192 = vld [vmem:[#allocation7 + $0x50] sm:$0xf]
    %v193 = vld [vmem:[#allocation7 + $0x60] sm:$0xf]
    %v194 = vld [vmem:[#allocation7 + $0x70] sm:$0xf]
    %v195 = vld [vmem:[#allocation7 + $0x80] sm:$0xf]
    %v196 = vld [vmem:[#allocation7 + $0x90] sm:$0xf]
    %v197 = vld [vmem:[#allocation7 + $0xa0] sm:$0xf]
    %v198 = vld [vmem:[#allocation7 + $0xb0] sm:$0xf]
    %v199 = vld [vmem:[#allocation7 + $0xc0] sm:$0xf]
    %v200 = vld [vmem:[#allocation7 + $0xd0] sm:$0xf]
    %v201 = vld [vmem:[#allocation7 + $0xe0] sm:$0xf]
    %v202 = vld [vmem:[#allocation7 + $0xf0] sm:$0xf]
    %v203 = vld [vmem:[#allocation8 + $0x1] ss:$0 sm:$0xff]
    %v220 = vunpack.c.l.b16 %v187
    %v221 = vunpack.c.l.b16 %v188
    %v222 = vunpack.c.l.b16 %v189
    %v223 = vunpack.c.l.b16 %v190
    %v224 = vunpack.c.l.b16 %v191
    %v225 = vunpack.c.l.b16 %v192
    %v226 = vunpack.c.l.b16 %v193
    %v227 = vunpack.c.l.b16 %v194
    %v228 = vunpack.c.l.b16 %v195
    %v229 = vunpack.c.l.b16 %v196
    %v230 = vunpack.c.l.b16 %v197
    %v231 = vunpack.c.l.b16 %v198
    %v232 = vunpack.c.l.b16 %v199
    %v233 = vunpack.c.l.b16 %v200
    %v234 = vunpack.c.l.b16 %v201
    %v235 = vunpack.c.l.b16 %v202
    %v236 = vpack.c.b16 %v221, %v220
    %v237 = vpack.c.b16 %v223, %v222
    %v238 = vpack.c.b16 %v225, %v224
    %v239 = vpack.c.b16 %v227, %v226
    %v240 = vpack.c.b16 %v229, %v228
    %v241 = vpack.c.b16 %v231, %v230
    %v242 = vpack.c.b16 %v233, %v232
    %v243 = vpack.c.b16 %v235, %v234
    %252 = vmatprep.subr.bf16.mxu0 0
    %253 = vmatpush1.bf16.msra.mxu0 %v243
    %254 = vmatprep.subr.bf16.mxu0 0
    %255 = vmatpush1.bf16.msra.mxu0 %v242
    %256 = vmatprep.subr.bf16.mxu0 0
    %257 = vmatpush1.bf16.msra.mxu0 %v241
    %258 = vmatprep.subr.bf16.mxu0 0
    %259 = vmatpush1.bf16.msra.mxu0 %v240
    %260 = vmatprep.subr.bf16.mxu0 0
    %261 = vmatpush1.bf16.msra.mxu0 %v239
    %262 = vmatprep.subr.bf16.mxu0 0
    %263 = vmatpush1.bf16.msra.mxu0 %v238
    %264 = vmatprep.subr.bf16.mxu0 0
    %265 = vmatpush1.bf16.msra.mxu0 %v237
    %266 = vmatprep.subr.bf16.mxu0 0
    %267 = vmatpush1.bf16.msra.mxu0 %v236
    %268 = vmatprep.subr.bf16.mxu0 0
    %269 = vmatpush2.bf16.msra.mxu0 0
    %270 = vmatprep.subr.bf16.mxu0 0
    %271 = vmatpush2.bf16.msra.mxu0 0
    %272 = vmatprep.subr.bf16.mxu0 0
    %273 = vmatpush2.bf16.msra.mxu0 0
    %274 = vmatprep.subr.bf16.mxu0 0
    %275 = vmatpush2.bf16.msra.mxu0 0
    %276 = vmatprep.subr.bf16.mxu0 0
    %277 = vmatpush2.bf16.msra.mxu0 0
    %278 = vmatprep.subr.bf16.mxu0 0
    %279 = vmatpush2.bf16.msra.mxu0 0
    %280 = vmatprep.subr.bf16.mxu0 0
    %281 = vmatpush2.bf16.msra.mxu0 0
    %282 = vmatprep.subr.bf16.mxu0 0
    %283 = vmatpush2.bf16.msra.mxu0 0
    %284 = vmatprep.mubr.bf16.mxu0 0
    %285 = vmatmul.mubr.bf16.gmra.mxu0 %v186
    %v286 = vpop.f32.mrf.mxu0
    %v287 = vadd.f32 %v203, %v286
    %v288 = vpop.f32.mrf.mxu0
    %v289 = vpop.f32.mrf.mxu0
    %v290 = vadd.f32 %v203, %v289
    %v291 = vpop.f32.mrf.mxu0
    %292 = vdwg.mxu0
    %v293 = vmax.f32 %v287, 0.0
    %v294 = vmax.f32 %v290, 0.0
    %v295 = vpack.c.bf16 %v294, %v293
    %v296 = vld [vmem:[#allocation7 + $0x4] sm:$0xf]
    %v297 = vld [vmem:[#allocation7 + $0x14] sm:$0xf]
    %v298 = vld [vmem:[#allocation7 + $0x24] sm:$0xf]
    %v299 = vld [vmem:[#allocation7 + $0x34] sm:$0xf]
    %v300 = vld [vmem:[#allocation7 + $0x44] sm:$0xf]
    %v301 = vld [vmem:[#allocation7 + $0x54] sm:$0xf]
    %v302 = vld [vmem:[#allocation7 + $0x64] sm:$0xf]
    %v303 = vld [vmem:[#allocation7 + $0x74] sm:$0xf]
    %v304 = vld [vmem:[#allocation7 + $0x84] sm:$0xf]
    %v305 = vld [vmem:[#allocation7 + $0x94] sm:$0xf]
    %v306 = vld [vmem:[#allocation7 + $0xa4] sm:$0xf]
    %v307 = vld [vmem:[#allocation7 + $0xb4] sm:$0xf]
    %v308 = vld [vmem:[#allocation7 + $0xc4] sm:$0xf]
    %v309 = vld [vmem:[#allocation7 + $0xd4] sm:$0xf]
    %v310 = vld [vmem:[#allocation7 + $0xe4] sm:$0xf]
    %v311 = vld [vmem:[#allocation7 + $0xf4] sm:$0xf]
    %v312 = vld [vmem:[#allocation8 + $0x2] ss:$0 sm:$0xff]
    %v329 = vunpack.c.l.b16 %v296
    %v330 = vunpack.c.l.b16 %v297
    %v331 = vunpack.c.l.b16 %v298
    %v332 = vunpack.c.l.b16 %v299
    %v333 = vunpack.c.l.b16 %v300
    %v334 = vunpack.c.l.b16 %v301
    %v335 = vunpack.c.l.b16 %v302
    %v336 = vunpack.c.l.b16 %v303
    %v337 = vunpack.c.l.b16 %v304
    %v338 = vunpack.c.l.b16 %v305
    %v339 = vunpack.c.l.b16 %v306
    %v340 = vunpack.c.l.b16 %v307
    %v341 = vunpack.c.l.b16 %v308
    %v342 = vunpack.c.l.b16 %v309
    %v343 = vunpack.c.l.b16 %v310
    %v344 = vunpack.c.l.b16 %v311
    %v345 = vpack.c.b16 %v330, %v329
    %v346 = vpack.c.b16 %v332, %v331
    %v347 = vpack.c.b16 %v334, %v333
    %v348 = vpack.c.b16 %v336, %v335
    %v349 = vpack.c.b16 %v338, %v337
    %v350 = vpack.c.b16 %v340, %v339
    %v351 = vpack.c.b16 %v342, %v341
    %v352 = vpack.c.b16 %v344, %v343
    %361 = vmatprep.subr.bf16.mxu0 0
    %362 = vmatpush1.bf16.msra.mxu0 %v352
    %363 = vmatprep.subr.bf16.mxu0 0
    %364 = vmatpush1.bf16.msra.mxu0 %v351
    %365 = vmatprep.subr.bf16.mxu0 0
    %366 = vmatpush1.bf16.msra.mxu0 %v350
    %367 = vmatprep.subr.bf16.mxu0 0
    %368 = vmatpush1.bf16.msra.mxu0 %v349
    %369 = vmatprep.subr.bf16.mxu0 0
    %370 = vmatpush1.bf16.msra.mxu0 %v348
    %371 = vmatprep.subr.bf16.mxu0 0
    %372 = vmatpush1.bf16.msra.mxu0 %v347
    %373 = vmatprep.subr.bf16.mxu0 0
    %374 = vmatpush1.bf16.msra.mxu0 %v346
    %375 = vmatprep.subr.bf16.mxu0 0
    %376 = vmatpush1.bf16.msra.mxu0 %v345
    %377 = vmatprep.subr.bf16.mxu0 0
    %378 = vmatpush2.bf16.msra.mxu0 0
    %379 = vmatprep.subr.bf16.mxu0 0
    %380 = vmatpush2.bf16.msra.mxu0 0
    %381 = vmatprep.subr.bf16.mxu0 0
    %382 = vmatpush2.bf16.msra.mxu0 0
    %383 = vmatprep.subr.bf16.mxu0 0
    %384 = vmatpush2.bf16.msra.mxu0 0
    %385 = vmatprep.subr.bf16.mxu0 0
    %386 = vmatpush2.bf16.msra.mxu0 0
    %387 = vmatprep.subr.bf16.mxu0 0
    %388 = vmatpush2.bf16.msra.mxu0 0
    %389 = vmatprep.subr.bf16.mxu0 0
    %390 = vmatpush2.bf16.msra.mxu0 0
    %391 = vmatprep.subr.bf16.mxu0 0
    %392 = vmatpush2.bf16.msra.mxu0 0
    %393 = vmatprep.mubr.bf16.mxu0 0
    %394 = vmatmul.mubr.bf16.gmra.mxu0 %v295
    %v395 = vpop.f32.mrf.mxu0
    %v396 = vadd.f32 %v312, %v395
    %v397 = vpop.f32.mrf.mxu0
    %v398 = vpop.f32.mrf.mxu0
    %v399 = vadd.f32 %v312, %v398
    %v400 = vpop.f32.mrf.mxu0
    %401 = vdwg.mxu0
    %v402 = vmax.f32 %v396, 0.0
    %v403 = vmax.f32 %v399, 0.0
    %v404 = vpack.c.bf16 %v403, %v402
    %v405 = vld [vmem:[#allocation7 + $0x8] sm:$0xff]
    %v406 = vld [vmem:[#allocation7 + $0x18] sm:$0xff]
    %v407 = vld [vmem:[#allocation7 + $0x28] sm:$0xff]
    %v408 = vld [vmem:[#allocation7 + $0x38] sm:$0xff]
    %v409 = vld [vmem:[#allocation7 + $0x48] sm:$0xff]
    %v410 = vld [vmem:[#allocation7 + $0x58] sm:$0xff]
    %v411 = vld [vmem:[#allocation7 + $0x68] sm:$0xff]
    %v412 = vld [vmem:[#allocation7 + $0x78] sm:$0xff]
    %v413 = vld [vmem:[#allocation7 + $0x88] sm:$0xff]
    %v414 = vld [vmem:[#allocation7 + $0x98] sm:$0xff]
    %v415 = vld [vmem:[#allocation7 + $0xa8] sm:$0xff]
    %v416 = vld [vmem:[#allocation7 + $0xb8] sm:$0xff]
    %v417 = vld [vmem:[#allocation7 + $0xc8] sm:$0xff]
    %v418 = vld [vmem:[#allocation7 + $0xd8] sm:$0xff]
    %v419 = vld [vmem:[#allocation7 + $0xe8] sm:$0xff]
    %v420 = vld [vmem:[#allocation7 + $0xf8] sm:$0xff]
    %s421 = scalar_lea.vmem [#allocation8], 3
    %v422 = vld [vmem:[%s421] ss:$8 sm:$0x3]
    %v424 = vlaneseq
    %v425 = vshrl.u32 %v424, 7
    %v426 = vsub.s32 0, %v425
    %v427 = vrot.slane %v422, %v426
    %v428 = vlaneseq
    %v429 = vshrl.u32 %v428, 7
    %v430 = vsub.s32 1, %v429
    %v431 = vrot.slane %v422, %v430
    %v450 = vunpack.c.l.b16 %v405
    %v451 = vunpack.c.h.b16 %v405
    %v452 = vunpack.c.l.b16 %v406
    %v453 = vunpack.c.h.b16 %v406
    %v454 = vunpack.c.l.b16 %v407
    %v455 = vunpack.c.h.b16 %v407
    %v456 = vunpack.c.l.b16 %v408
    %v457 = vunpack.c.h.b16 %v408
    %v458 = vunpack.c.l.b16 %v409
    %v459 = vunpack.c.h.b16 %v409
    %v460 = vunpack.c.l.b16 %v410
    %v461 = vunpack.c.h.b16 %v410
    %v462 = vunpack.c.l.b16 %v411
    %v463 = vunpack.c.h.b16 %v411
    %v464 = vunpack.c.l.b16 %v412
    %v465 = vunpack.c.h.b16 %v412
    %v466 = vunpack.c.l.b16 %v413
    %v467 = vunpack.c.h.b16 %v413
    %v468 = vunpack.c.l.b16 %v414
    %v469 = vunpack.c.h.b16 %v414
    %v470 = vunpack.c.l.b16 %v415
    %v471 = vunpack.c.h.b16 %v415
    %v472 = vunpack.c.l.b16 %v416
    %v473 = vunpack.c.h.b16 %v416
    %v474 = vunpack.c.l.b16 %v417
    %v475 = vunpack.c.h.b16 %v417
    %v476 = vunpack.c.l.b16 %v418
    %v477 = vunpack.c.h.b16 %v418
    %v478 = vunpack.c.l.b16 %v419
    %v479 = vunpack.c.h.b16 %v419
    %v480 = vunpack.c.l.b16 %v420
    %v481 = vunpack.c.h.b16 %v420
    %v482 = vpack.c.b16 %v452, %v450
    %v483 = vpack.c.b16 %v453, %v451
    %v484 = vpack.c.b16 %v456, %v454
    %v485 = vpack.c.b16 %v457, %v455
    %v486 = vpack.c.b16 %v460, %v458
    %v487 = vpack.c.b16 %v461, %v459
    %v488 = vpack.c.b16 %v464, %v462
    %v489 = vpack.c.b16 %v465, %v463
    %v490 = vpack.c.b16 %v468, %v466
    %v491 = vpack.c.b16 %v469, %v467
    %v492 = vpack.c.b16 %v472, %v470
    %v493 = vpack.c.b16 %v473, %v471
    %v494 = vpack.c.b16 %v476, %v474
    %v495 = vpack.c.b16 %v477, %v475
    %v496 = vpack.c.b16 %v480, %v478
    %v497 = vpack.c.b16 %v481, %v479
    %514 = vmatprep.subr.bf16.mxu0 %v497
    %515 = vmatpush1.bf16.msra.mxu0 %v496
    %516 = vmatprep.subr.bf16.mxu0 %v495
    %517 = vmatpush1.bf16.msra.mxu0 %v494
    %518 = vmatprep.subr.bf16.mxu0 %v493
    %519 = vmatpush1.bf16.msra.mxu0 %v492
    %520 = vmatprep.subr.bf16.mxu0 %v491
    %521 = vmatpush1.bf16.msra.mxu0 %v490
    %522 = vmatprep.subr.bf16.mxu0 %v489
    %523 = vmatpush1.bf16.msra.mxu0 %v488
    %524 = vmatprep.subr.bf16.mxu0 %v487
    %525 = vmatpush1.bf16.msra.mxu0 %v486
    %526 = vmatprep.subr.bf16.mxu0 %v485
    %527 = vmatpush1.bf16.msra.mxu0 %v484
    %528 = vmatprep.subr.bf16.mxu0 %v483
    %529 = vmatpush1.bf16.msra.mxu0 %v482
    %530 = vmatprep.subr.bf16.mxu0 0
    %531 = vmatpush2.bf16.msra.mxu0 0
    %532 = vmatprep.subr.bf16.mxu0 0
    %533 = vmatpush2.bf16.msra.mxu0 0
    %534 = vmatprep.subr.bf16.mxu0 0
    %535 = vmatpush2.bf16.msra.mxu0 0
    %536 = vmatprep.subr.bf16.mxu0 0
    %537 = vmatpush2.bf16.msra.mxu0 0
    %538 = vmatprep.subr.bf16.mxu0 0
    %539 = vmatpush2.bf16.msra.mxu0 0
    %540 = vmatprep.subr.bf16.mxu0 0
    %541 = vmatpush2.bf16.msra.mxu0 0
    %542 = vmatprep.subr.bf16.mxu0 0
    %543 = vmatpush2.bf16.msra.mxu0 0
    %544 = vmatprep.subr.bf16.mxu0 0
    %545 = vmatpush2.bf16.msra.mxu0 0
    %546 = vmatprep.mubr.bf16.mxu0 0
    %547 = vmatmul.mubr.bf16.gmra.mxu0 %v404
    %v548 = vpop.f32.mrf.mxu0
    %v549 = vadd.f32 %v427, %v548
    %v550 = vpop.f32.mrf.mxu0
    %v551 = vadd.f32 %v431, %v550
    %v552 = vpop.f32.mrf.mxu0
    %v553 = vadd.f32 %v427, %v552
    %v554 = vpop.f32.mrf.mxu0
    %v555 = vadd.f32 %v431, %v554
    %556 = vdwg.mxu0
    %v557 = vmax.f32 %v549, 0.0
    %v558 = vmax.f32 %v553, 0.0
    %v559 = vld [vmem:[#allocation8 + $0x4] ss:$0 sm:$0xff]
    %v560 = vld [vmem:[#allocation8 + $0x5] ss:$0 sm:$0xff]
    %v561 = vmul.f32 %v557, %v559
    %v562 = vmul.f32 %v558, %v559
    %563 = vadd.xlane.f32.xlu0 %v561
    %v564 = vpop.xlane.xlu0 %563
    %565 = vadd.xlane.f32.xlu0 %v562
    %v566 = vpop.xlane.xlu0 %565
    %v567 = vadd.f32 %v564, %v560
    %v568 = vadd.f32 %v566, %v560
    %570 = vset.pattern.permute.xlu0 0
    %571 = vperm.xlu0 %570, %v567
    %v572 = vpop.permute.xlu0 %571
    %575 = vset.pattern.permute.xlu0 0
    %576 = vperm.xlu0 %575, %v568
    %v577 = vpop.permute.xlu0 %576
    %v579 = vadd.f32 %v572, %v551
    %v580 = vadd.f32 %v577, %v555
    %581 = vst [vmem:[#allocation10] sm:$0xff] %v579
    %582 = vst [vmem:[#allocation10 + $0x8] sm:$0xff] %v580
    %p583 = scmp.lt.s32.totalorder 0, 0
    // Predicated region
    $region34: #{tpu_custom_call.1} parent=1 // pred_check
      %p584 = pneg %p583
    $region35: #{tpu_custom_call.1} parent=1 // pred_check_branch
      %586 = sbr.rel (%p584) target = $region37
    $region36: #{tpu_custom_call.1} parent=1 // pred_region
      %v587 = vadd.f32 %v551, %v555
      %588 = vadd.xlane.f32.xlu0 %v587
      %v589 = vpop.xlane.xlu0 %588
      %v590 = vrot.slane %v589, 4
      %v591 = vadd.f32 %v589, %v590
      %v592 = vrot.slane %v591, 2
      %v593 = vadd.f32 %v591, %v592
      %v594 = vrot.slane %v593, 1
      %v595 = vadd.f32 %v593, %v594
      %s596 = vtos %v595
      %v597 = vstv %s596
      %598 = vst [vmem:[#allocation11] sm:$0xff] %v597
    $region37: #{tpu_custom_call.1} parent=1 // pred_fallthru
      _
    %p599 = scmp.eq.s32.totalorder 0, 0
    // Predicated region
    $region38: #{tpu_custom_call.1} parent=1 // pred_check
      %p600 = pneg %p599
    $region39: #{tpu_custom_call.1} parent=1 // pred_check_branch
      %602 = sbr.rel (%p600) target = $region41
    $region40: #{tpu_custom_call.1} parent=1 // pred_region
      %v603 = vlaneseq
      %v604 = vshrl.u32 %v603, 7
      %v605 = vadd.s32 %v604, 8
      %s606 = smul.u32 0, 16
      %v607 = vstv %s606
      %v608 = vadd.s32 %v604, %v607
      %v609 = vadd.s32 %v605, %v607
      %vm610 = vcmp.lt.s32.totalorder %v608, 4
      %vm611 = vcmp.lt.s32.totalorder %v609, 4
      %v612 = vsel %vm610, %v551, 0.0
      %v613 = vsel %vm611, %v555, 0.0
      %v614 = vadd.f32 %v612, %v613
      %615 = vadd.xlane.f32.xlu0 %v614
      %v616 = vpop.xlane.xlu0 %615
      %v617 = vrot.slane %v616, 4
      %v618 = vadd.f32 %v616, %v617
      %v619 = vrot.slane %v618, 2
      %v620 = vadd.f32 %v618, %v619
      %v621 = vrot.slane %v620, 1
      %v622 = vadd.f32 %v620, %v621
      %s623 = vtos %v622
      %v624 = vstv %s623
      %625 = vst [vmem:[#allocation11] sm:$0xff] %v624
    $region41: #{tpu_custom_call.1} parent=1 // pred_fallthru
      _
    // Predicated region
    $region42: #{tpu_custom_call.1} parent=1 // pred_check
      _
    $region43: #{tpu_custom_call.1} parent=1 // pred_check_branch
      %627 = sbr.rel (0) target = $region45
    $region44: #{tpu_custom_call.1} parent=1 // pred_region
      %s629 = ssub.s32 256, 64
      %630 = vsyncadd [#allocation4], %s629
      %s631 = sshll.u32 [#allocation10], 4
      %s632 = int_to_ptr.vmem [resolvable:$true] %s631
      %637 = dma.vmem_to_hbm [thread:$0]  %s632, 64, %s4, [#allocation4], 64, 64, 4
    $region45: #{tpu_custom_call.1} parent=1 // pred_fallthru
      _
    // Predicated region
    $region46: #{tpu_custom_call.1} parent=1 // pred_check
      _
    $region47: #{tpu_custom_call.1} parent=1 // pred_check_branch
      %639 = sbr.rel (0) target = $region49
    $region48: #{tpu_custom_call.1} parent=1 // pred_region
      %s641 = ssub.s32 128, 128
      %642 = vsyncadd [#allocation12], %s641
      %s644 = sshll.u32 [#allocation11], 4
      %s645 = int_to_ptr.vmem [resolvable:$true] %s644
      %647 = dma.vmem_to_hbm [thread:$0]  %s645, 128, %s5, [#allocation12]
    $region49: #{tpu_custom_call.1} parent=1 // pred_fallthru
      _
    // Predicated region
    $region50: #{tpu_custom_call.1} parent=1 // pred_check
      _
    $region51: #{tpu_custom_call.1} parent=1 // pred_check_branch
      %649 = sbr.rel (0) target = $region53
    $region52: #{tpu_custom_call.1} parent=1 // pred_region
      %650 = dma.done [#allocation4], 256
    $region53: #{tpu_custom_call.1} parent=1 // pred_fallthru
      _
    // Predicated region
    $region54: #{tpu_custom_call.1} parent=1 // pred_check
      _
    $region55: #{tpu_custom_call.1} parent=1 // pred_check_branch
      %652 = sbr.rel (0) target = $region57
    $region56: #{tpu_custom_call.1} parent=1 // pred_region
      %653 = dma.done [#allocation12], 128
    $region57: #{tpu_custom_call.1} parent=1 // pred_fallthru
      _
    %654 = vsyncpa [#allocation3], 1
    %655 = vsyncpa [#allocation6], 1
    %656 = vsyncpa [#allocation9], 1
    %657 = vsyncpa [#allocation4], 1
    %658 = vsyncpa [#allocation12], 1

// kernel: tpu_custom_call.1
$region0: #{tpu_custom_call.1}
  #allocation0 [shape = 'u32[]', space=smem, size = 0x4, offset = 0x4, fixed_abs, tag = 'smem constant byte address 0x4 - core index']
  #allocation1 [shape = 'u32[144,128]{1,0:T(1,128)}', space=vmem, size = 0x12000, scoped, tag = 'internal scratch']
  %s0 = inlined_call_operand.hbm [shape: f32[4,128], index: 0, kind: input, shape index: {}]
  %s1 = inlined_call_operand.hbm [shape: bf16[128,128], index: 1, kind: input, shape index: {}]
  %s2 = inlined_call_operand.hbm [shape: bf16[128,512], index: 2, kind: input, shape index: {}]
  %s3 = inlined_call_operand.hbm [shape: f32[8,256], index: 3, kind: input, shape index: {}]
  %s4 = inlined_call_operand.hbm [shape: f32[4,128], index: 4, kind: output, shape index: {0}]
  %s5 = inlined_call_operand.hbm [shape: f32[1,8,128], index: 5, kind: output, shape index: {1}]
  %6 = xla_tuple %s4, %s5
  %s7 = sld [smem:[#allocation0]]
  $region58: #{tpu_custom_call.1} parent=0
    _
  %s9 = ssub.s32 1, %s7
  %s10 = scalar_select 0, %s9, %s7
  $region1: #{tpu_custom_call.1} parent=0
    #allocation2 [shape = 'u8[8192]{0}', space=vmem, size = 0x2000, scoped, tag = 'input window, operand 0, single buffered']
    #allocation3 [shape = 's32[1]{0}', space=sflag, size = 0x4, scoped, tag = 'scoped memory for tpu_custom_call.1']
    #allocation4 [shape = 's32[1]{0}', space=sflag, size = 0x4, scoped, tag = 'scoped memory for tpu_custom_call.1']
    #allocation5 [shape = 'u8[32768]{0}', space=vmem, size = 0x8000, scoped, tag = 'input window, operand 1, single buffered']
    #allocation6 [shape = 's32[1]{0}', space=sflag, size = 0x4, scoped, tag = 'scoped memory for tpu_custom_call.1']
    #allocation7 [shape = 'u8[131072]{0}', space=vmem, size = 0x20000, scoped, tag = 'input window, operand 2, single buffered']
    #allocation8 [shape = 'u8[8192]{0}', space=vmem, size = 0x2000, scoped, tag = 'input window, operand 3, single buffered']
    #allocation9 [shape = 's32[1]{0}', space=sflag, size = 0x4, scoped, tag = 'scoped memory for tpu_custom_call.1']
    #allocation10 [shape = 'u8[8192]{0}', space=vmem, size = 0x2000, scoped, tag = 'output window, operand 0, single buffered']
    #allocation11 [shape = 'u8[4096]{0}', space=vmem, size = 0x1000, scoped, tag = 'output window, operand 1, single buffered']
    #allocation12 [shape = 's32[1]{0}', space=sflag, size = 0x4, scoped, tag = 'scoped memory for tpu_custom_call.1']
    %11 = vsyncpa [#allocation3], 0
    %12 = vsyncpa [#allocation6], 0
    %13 = vsyncpa [#allocation9], 0
    %14 = vsyncpa [#allocation4], 0
    %15 = vsyncpa [#allocation12], 0
    // Predicated region
    $region2: #{tpu_custom_call.1} parent=1 // pred_check
      _
    $region3: #{tpu_custom_call.1} parent=1 // pred_check_branch
      %17 = sbr.rel (0) target = $region5
    $region4: #{tpu_custom_call.1} parent=1 // pred_region
      %s19 = ssub.s32 256, 64
      %20 = vsyncadd [#allocation3], %s19
      %s21 = sshll.u32 [#allocation2], 4
      %s22 = int_to_ptr.vmem [resolvable:$true] %s21
      %27 = dma.hbm_to_vmem [thread:$0]  %s0, 64, %s22, [#allocation3], 64, 64, 4
    $region5: #{tpu_custom_call.1} parent=1 // pred_fallthru
      _
    // Predicated region
    $region6: #{tpu_custom_call.1} parent=1 // pred_check
      _
    $region7: #{tpu_custom_call.1} parent=1 // pred_check_branch
      %29 = sbr.rel (0) target = $region9
    $region8: #{tpu_custom_call.1} parent=1 // pred_region
      %s31 = ssub.s32 1024, 1024
      %32 = vsyncadd [#allocation6], %s31
      %s33 = sshll.u32 [#allocation5], 4
      %s34 = int_to_ptr.vmem [resolvable:$true] %s33
      %39 = dma.hbm_to_vmem [thread:$0]  %s1, 1024, %s34, [#allocation6], 64, 64, 4
    $region9: #{tpu_custom_call.1} parent=1 // pred_fallthru
      _
    // Predicated region
    $region10: #{tpu_custom_call.1} parent=1 // pred_check
      _
    $region11: #{tpu_custom_call.1} parent=1 // pred_check_branch
      %41 = sbr.rel (0) target = $region13
    $region12: #{tpu_custom_call.1} parent=1 // pred_region
      %s43 = ssub.s32 4096, 4096
      %44 = vsyncadd [#allocation6], %s43
      %s45 = sshll.u32 [#allocation7], 4
      %s46 = int_to_ptr.vmem [resolvable:$true] %s45
      %51 = dma.hbm_to_vmem [thread:$0]  %s2, 4096, %s46, [#allocation6], 256, 256, 16
    $region13: #{tpu_custom_call.1} parent=1 // pred_fallthru
      _
    // Predicated region
    $region14: #{tpu_custom_call.1} parent=1 // pred_check
      _
    $region15: #{tpu_custom_call.1} parent=1 // pred_check_branch
      %53 = sbr.rel (0) target = $region17
    $region16: #{tpu_custom_call.1} parent=1 // pred_region
      %s55 = ssub.s32 256, 256
      %56 = vsyncadd [#allocation9], %s55
      %s58 = sshll.u32 [#allocation8], 4
      %s59 = int_to_ptr.vmem [resolvable:$true] %s58
      %61 = dma.hbm_to_vmem [thread:$0]  %s3, 256, %s59, [#allocation9]
    $region17: #{tpu_custom_call.1} parent=1 // pred_fallthru
      _
    // Predicated region
    $region18: #{tpu_custom_call.1} parent=1 // pred_check
      _
    $region19: #{tpu_custom_call.1} parent=1 // pred_check_branch
      %63 = sbr.rel (0) target = $region21
    $region20: #{tpu_custom_call.1} parent=1 // pred_region
      %64 = dma.done [#allocation3], 256
    $region21: #{tpu_custom_call.1} parent=1 // pred_fallthru
      _
    // Predicated region
    $region22: #{tpu_custom_call.1} parent=1 // pred_check
      _
    $region23: #{tpu_custom_call.1} parent=1 // pred_check_branch
      %66 = sbr.rel (0) target = $region25
    $region24: #{tpu_custom_call.1} parent=1 // pred_region
      %67 = dma.done [#allocation6], 1024
    $region25: #{tpu_custom_call.1} parent=1 // pred_fallthru
      _
    // Predicated region
    $region26: #{tpu_custom_call.1} parent=1 // pred_check
      _
    $region27: #{tpu_custom_call.1} parent=1 // pred_check_branch
      %69 = sbr.rel (0) target = $region29
    $region28: #{tpu_custom_call.1} parent=1 // pred_region
      %70 = dma.done [#allocation6], 4096
    $region29: #{tpu_custom_call.1} parent=1 // pred_fallthru
      _
    // Predicated region
    $region30: #{tpu_custom_call.1} parent=1 // pred_check
      _
    $region31: #{tpu_custom_call.1} parent=1 // pred_check_branch
      %72 = sbr.rel (0) target = $region33
    $region32: #{tpu_custom_call.1} parent=1 // pred_region
      %73 = dma.done [#allocation9], 256
    $region33: #{tpu_custom_call.1} parent=1 // pred_fallthru
      _
    %v75 = vld [vmem:[#allocation2] sm:$0xff]
    %v76 = vld [vmem:[#allocation2 + $0x8] sm:$0xff]
    %v77 = vpack.c.bf16 %v76, %v75
    %v78 = vld [vmem:[#allocation5] sm:$0xf]
    %v79 = vld [vmem:[#allocation5 + $0x4] sm:$0xf]
    %v80 = vld [vmem:[#allocation5 + $0x8] sm:$0xf]
    %v81 = vld [vmem:[#allocation5 + $0xc] sm:$0xf]
    %v82 = vld [vmem:[#allocation5 + $0x10] sm:$0xf]
    %v83 = vld [vmem:[#allocation5 + $0x14] sm:$0xf]
    %v84 = vld [vmem:[#allocation5 + $0x18] sm:$0xf]
    %v85 = vld [vmem:[#allocation5 + $0x1c] sm:$0xf]
    %v86 = vld [vmem:[#allocation5 + $0x20] sm:$0xf]
    %v87 = vld [vmem:[#allocation5 + $0x24] sm:$0xf]
    %v88 = vld [vmem:[#allocation5 + $0x28] sm:$0xf]
    %v89 = vld [vmem:[#allocation5 + $0x2c] sm:$0xf]
    %v90 = vld [vmem:[#allocation5 + $0x30] sm:$0xf]
    %v91 = vld [vmem:[#allocation5 + $0x34] sm:$0xf]
    %v92 = vld [vmem:[#allocation5 + $0x38] sm:$0xf]
    %v93 = vld [vmem:[#allocation5 + $0x3c] sm:$0xf]
    %v94 = vld [vmem:[#allocation8] ss:$0 sm:$0xff]
    %v111 = vunpack.c.l.b16 %v78
    %v112 = vunpack.c.l.b16 %v79
    %v113 = vunpack.c.l.b16 %v80
    %v114 = vunpack.c.l.b16 %v81
    %v115 = vunpack.c.l.b16 %v82
    %v116 = vunpack.c.l.b16 %v83
    %v117 = vunpack.c.l.b16 %v84
    %v118 = vunpack.c.l.b16 %v85
    %v119 = vunpack.c.l.b16 %v86
    %v120 = vunpack.c.l.b16 %v87
    %v121 = vunpack.c.l.b16 %v88
    %v122 = vunpack.c.l.b16 %v89
    %v123 = vunpack.c.l.b16 %v90
    %v124 = vunpack.c.l.b16 %v91
    %v125 = vunpack.c.l.b16 %v92
    %v126 = vunpack.c.l.b16 %v93
    %v127 = vpack.c.b16 %v112, %v111
    %v128 = vpack.c.b16 %v114, %v113
    %v129 = vpack.c.b16 %v116, %v115
    %v130 = vpack.c.b16 %v118, %v117
    %v131 = vpack.c.b16 %v120, %v119
    %v132 = vpack.c.b16 %v122, %v121
    %v133 = vpack.c.b16 %v124, %v123
    %v134 = vpack.c.b16 %v126, %v125
    %143 = vmatprep.subr.bf16.mxu0 0
    %144 = vmatpush1.bf16.msra.mxu0 %v134
    %145 = vmatprep.subr.bf16.mxu0 0
    %146 = vmatpush1.bf16.msra.mxu0 %v133
    %147 = vmatprep.subr.bf16.mxu0 0
    %148 = vmatpush1.bf16.msra.mxu0 %v132
    %149 = vmatprep.subr.bf16.mxu0 0
    %150 = vmatpush1.bf16.msra.mxu0 %v131
    %151 = vmatprep.subr.bf16.mxu0 0
    %152 = vmatpush1.bf16.msra.mxu0 %v130
    %153 = vmatprep.subr.bf16.mxu0 0
    %154 = vmatpush1.bf16.msra.mxu0 %v129
    %155 = vmatprep.subr.bf16.mxu0 0
    %156 = vmatpush1.bf16.msra.mxu0 %v128
    %157 = vmatprep.subr.bf16.mxu0 0
    %158 = vmatpush1.bf16.msra.mxu0 %v127
    %159 = vmatprep.subr.bf16.mxu0 0
    %160 = vmatpush2.bf16.msra.mxu0 0
    %161 = vmatprep.subr.bf16.mxu0 0
    %162 = vmatpush2.bf16.msra.mxu0 0
    %163 = vmatprep.subr.bf16.mxu0 0
    %164 = vmatpush2.bf16.msra.mxu0 0
    %165 = vmatprep.subr.bf16.mxu0 0
    %166 = vmatpush2.bf16.msra.mxu0 0
    %167 = vmatprep.subr.bf16.mxu0 0
    %168 = vmatpush2.bf16.msra.mxu0 0
    %169 = vmatprep.subr.bf16.mxu0 0
    %170 = vmatpush2.bf16.msra.mxu0 0
    %171 = vmatprep.subr.bf16.mxu0 0
    %172 = vmatpush2.bf16.msra.mxu0 0
    %173 = vmatprep.subr.bf16.mxu0 0
    %174 = vmatpush2.bf16.msra.mxu0 0
    %175 = vmatprep.mubr.bf16.mxu0 0
    %176 = vmatmul.mubr.bf16.gmra.mxu0 %v77
    %v177 = vpop.f32.mrf.mxu0
    %v178 = vadd.f32 %v94, %v177
    %v179 = vpop.f32.mrf.mxu0
    %v180 = vpop.f32.mrf.mxu0
    %v181 = vadd.f32 %v94, %v180
    %v182 = vpop.f32.mrf.mxu0
    %183 = vdwg.mxu0
    %v184 = vmax.f32 %v178, 0.0
    %v185 = vmax.f32 %v181, 0.0
    %v186 = vpack.c.bf16 %v185, %v184
    %v187 = vld [vmem:[#allocation7] sm:$0xf]
    %v188 = vld [vmem:[#allocation7 + $0x10] sm:$0xf]
    %v189 = vld [vmem:[#allocation7 + $0x20] sm:$0xf]
    %v190 = vld [vmem:[#allocation7 + $0x30] sm:$0xf]
    %v191 = vld [vmem:[#allocation7 + $0x40] sm:$0xf]
    %v192 = vld [vmem:[#allocation7 + $0x50] sm:$0xf]
    %v193 = vld [vmem:[#allocation7 + $0x60] sm:$0xf]
    %v194 = vld [vmem:[#allocation7 + $0x70] sm:$0xf]
    %v195 = vld [vmem:[#allocation7 + $0x80] sm:$0xf]
    %v196 = vld [vmem:[#allocation7 + $0x90] sm:$0xf]
    %v197 = vld [vmem:[#allocation7 + $0xa0] sm:$0xf]
    %v198 = vld [vmem:[#allocation7 + $0xb0] sm:$0xf]
    %v199 = vld [vmem:[#allocation7 + $0xc0] sm:$0xf]
    %v200 = vld [vmem:[#allocation7 + $0xd0] sm:$0xf]
    %v201 = vld [vmem:[#allocation7 + $0xe0] sm:$0xf]
    %v202 = vld [vmem:[#allocation7 + $0xf0] sm:$0xf]
    %v203 = vld [vmem:[#allocation8 + $0x1] ss:$0 sm:$0xff]
    %v220 = vunpack.c.l.b16 %v187
    %v221 = vunpack.c.l.b16 %v188
    %v222 = vunpack.c.l.b16 %v189
    %v223 = vunpack.c.l.b16 %v190
    %v224 = vunpack.c.l.b16 %v191
    %v225 = vunpack.c.l.b16 %v192
    %v226 = vunpack.c.l.b16 %v193
    %v227 = vunpack.c.l.b16 %v194
    %v228 = vunpack.c.l.b16 %v195
    %v229 = vunpack.c.l.b16 %v196
    %v230 = vunpack.c.l.b16 %v197
    %v231 = vunpack.c.l.b16 %v198
    %v232 = vunpack.c.l.b16 %v199
    %v233 = vunpack.c.l.b16 %v200
    %v234 = vunpack.c.l.b16 %v201
    %v235 = vunpack.c.l.b16 %v202
    %v236 = vpack.c.b16 %v221, %v220
    %v237 = vpack.c.b16 %v223, %v222
    %v238 = vpack.c.b16 %v225, %v224
    %v239 = vpack.c.b16 %v227, %v226
    %v240 = vpack.c.b16 %v229, %v228
    %v241 = vpack.c.b16 %v231, %v230
    %v242 = vpack.c.b16 %v233, %v232
    %v243 = vpack.c.b16 %v235, %v234
    %252 = vmatprep.subr.bf16.mxu0 0
    %253 = vmatpush1.bf16.msra.mxu0 %v243
    %254 = vmatprep.subr.bf16.mxu0 0
    %255 = vmatpush1.bf16.msra.mxu0 %v242
    %256 = vmatprep.subr.bf16.mxu0 0
    %257 = vmatpush1.bf16.msra.mxu0 %v241
    %258 = vmatprep.subr.bf16.mxu0 0
    %259 = vmatpush1.bf16.msra.mxu0 %v240
    %260 = vmatprep.subr.bf16.mxu0 0
    %261 = vmatpush1.bf16.msra.mxu0 %v239
    %262 = vmatprep.subr.bf16.mxu0 0
    %263 = vmatpush1.bf16.msra.mxu0 %v238
    %264 = vmatprep.subr.bf16.mxu0 0
    %265 = vmatpush1.bf16.msra.mxu0 %v237
    %266 = vmatprep.subr.bf16.mxu0 0
    %267 = vmatpush1.bf16.msra.mxu0 %v236
    %268 = vmatprep.subr.bf16.mxu0 0
    %269 = vmatpush2.bf16.msra.mxu0 0
    %270 = vmatprep.subr.bf16.mxu0 0
    %271 = vmatpush2.bf16.msra.mxu0 0
    %272 = vmatprep.subr.bf16.mxu0 0
    %273 = vmatpush2.bf16.msra.mxu0 0
    %274 = vmatprep.subr.bf16.mxu0 0
    %275 = vmatpush2.bf16.msra.mxu0 0
    %276 = vmatprep.subr.bf16.mxu0 0
    %277 = vmatpush2.bf16.msra.mxu0 0
    %278 = vmatprep.subr.bf16.mxu0 0
    %279 = vmatpush2.bf16.msra.mxu0 0
    %280 = vmatprep.subr.bf16.mxu0 0
    %281 = vmatpush2.bf16.msra.mxu0 0
    %282 = vmatprep.subr.bf16.mxu0 0
    %283 = vmatpush2.bf16.msra.mxu0 0
    %284 = vmatprep.mubr.bf16.mxu0 0
    %285 = vmatmul.mubr.bf16.gmra.mxu0 %v186
    %v286 = vpop.f32.mrf.mxu0
    %v287 = vadd.f32 %v203, %v286
    %v288 = vpop.f32.mrf.mxu0
    %v289 = vpop.f32.mrf.mxu0
    %v290 = vadd.f32 %v203, %v289
    %v291 = vpop.f32.mrf.mxu0
    %292 = vdwg.mxu0
    %v293 = vmax.f32 %v287, 0.0
    %v294 = vmax.f32 %v290, 0.0
    %v295 = vpack.c.bf16 %v294, %v293
    %v296 = vld [vmem:[#allocation7 + $0x4] sm:$0xf]
    %v297 = vld [vmem:[#allocation7 + $0x14] sm:$0xf]
    %v298 = vld [vmem:[#allocation7 + $0x24] sm:$0xf]
    %v299 = vld [vmem:[#allocation7 + $0x34] sm:$0xf]
    %v300 = vld [vmem:[#allocation7 + $0x44] sm:$0xf]
    %v301 = vld [vmem:[#allocation7 + $0x54] sm:$0xf]
    %v302 = vld [vmem:[#allocation7 + $0x64] sm:$0xf]
    %v303 = vld [vmem:[#allocation7 + $0x74] sm:$0xf]
    %v304 = vld [vmem:[#allocation7 + $0x84] sm:$0xf]
    %v305 = vld [vmem:[#allocation7 + $0x94] sm:$0xf]
    %v306 = vld [vmem:[#allocation7 + $0xa4] sm:$0xf]
    %v307 = vld [vmem:[#allocation7 + $0xb4] sm:$0xf]
    %v308 = vld [vmem:[#allocation7 + $0xc4] sm:$0xf]
    %v309 = vld [vmem:[#allocation7 + $0xd4] sm:$0xf]
    %v310 = vld [vmem:[#allocation7 + $0xe4] sm:$0xf]
    %v311 = vld [vmem:[#allocation7 + $0xf4] sm:$0xf]
    %v312 = vld [vmem:[#allocation8 + $0x2] ss:$0 sm:$0xff]
    %v329 = vunpack.c.l.b16 %v296
    %v330 = vunpack.c.l.b16 %v297
    %v331 = vunpack.c.l.b16 %v298
    %v332 = vunpack.c.l.b16 %v299
    %v333 = vunpack.c.l.b16 %v300
    %v334 = vunpack.c.l.b16 %v301
    %v335 = vunpack.c.l.b16 %v302
    %v336 = vunpack.c.l.b16 %v303
    %v337 = vunpack.c.l.b16 %v304
    %v338 = vunpack.c.l.b16 %v305
    %v339 = vunpack.c.l.b16 %v306
    %v340 = vunpack.c.l.b16 %v307
    %v341 = vunpack.c.l.b16 %v308
    %v342 = vunpack.c.l.b16 %v309
    %v343 = vunpack.c.l.b16 %v310
    %v344 = vunpack.c.l.b16 %v311
    %v345 = vpack.c.b16 %v330, %v329
    %v346 = vpack.c.b16 %v332, %v331
    %v347 = vpack.c.b16 %v334, %v333
    %v348 = vpack.c.b16 %v336, %v335
    %v349 = vpack.c.b16 %v338, %v337
    %v350 = vpack.c.b16 %v340, %v339
    %v351 = vpack.c.b16 %v342, %v341
    %v352 = vpack.c.b16 %v344, %v343
    %361 = vmatprep.subr.bf16.mxu0 0
    %362 = vmatpush1.bf16.msra.mxu0 %v352
    %363 = vmatprep.subr.bf16.mxu0 0
    %364 = vmatpush1.bf16.msra.mxu0 %v351
    %365 = vmatprep.subr.bf16.mxu0 0
    %366 = vmatpush1.bf16.msra.mxu0 %v350
    %367 = vmatprep.subr.bf16.mxu0 0
    %368 = vmatpush1.bf16.msra.mxu0 %v349
    %369 = vmatprep.subr.bf16.mxu0 0
    %370 = vmatpush1.bf16.msra.mxu0 %v348
    %371 = vmatprep.subr.bf16.mxu0 0
    %372 = vmatpush1.bf16.msra.mxu0 %v347
    %373 = vmatprep.subr.bf16.mxu0 0
    %374 = vmatpush1.bf16.msra.mxu0 %v346
    %375 = vmatprep.subr.bf16.mxu0 0
    %376 = vmatpush1.bf16.msra.mxu0 %v345
    %377 = vmatprep.subr.bf16.mxu0 0
    %378 = vmatpush2.bf16.msra.mxu0 0
    %379 = vmatprep.subr.bf16.mxu0 0
    %380 = vmatpush2.bf16.msra.mxu0 0
    %381 = vmatprep.subr.bf16.mxu0 0
    %382 = vmatpush2.bf16.msra.mxu0 0
    %383 = vmatprep.subr.bf16.mxu0 0
    %384 = vmatpush2.bf16.msra.mxu0 0
    %385 = vmatprep.subr.bf16.mxu0 0
    %386 = vmatpush2.bf16.msra.mxu0 0
    %387 = vmatprep.subr.bf16.mxu0 0
    %388 = vmatpush2.bf16.msra.mxu0 0
    %389 = vmatprep.subr.bf16.mxu0 0
    %390 = vmatpush2.bf16.msra.mxu0 0
    %391 = vmatprep.subr.bf16.mxu0 0
    %392 = vmatpush2.bf16.msra.mxu0 0
    %393 = vmatprep.mubr.bf16.mxu0 0
    %394 = vmatmul.mubr.bf16.gmra.mxu0 %v295
    %v395 = vpop.f32.mrf.mxu0
    %v396 = vadd.f32 %v312, %v395
    %v397 = vpop.f32.mrf.mxu0
    %v398 = vpop.f32.mrf.mxu0
    %v399 = vadd.f32 %v312, %v398
    %v400 = vpop.f32.mrf.mxu0
    %401 = vdwg.mxu0
    %v402 = vmax.f32 %v396, 0.0
    %v403 = vmax.f32 %v399, 0.0
    %v404 = vpack.c.bf16 %v403, %v402
    %v405 = vld [vmem:[#allocation7 + $0x8] sm:$0xff]
    %v406 = vld [vmem:[#allocation7 + $0x18] sm:$0xff]
    %v407 = vld [vmem:[#allocation7 + $0x28] sm:$0xff]
    %v408 = vld [vmem:[#allocation7 + $0x38] sm:$0xff]
    %v409 = vld [vmem:[#allocation7 + $0x48] sm:$0xff]
    %v410 = vld [vmem:[#allocation7 + $0x58] sm:$0xff]
    %v411 = vld [vmem:[#allocation7 + $0x68] sm:$0xff]
    %v412 = vld [vmem:[#allocation7 + $0x78] sm:$0xff]
    %v413 = vld [vmem:[#allocation7 + $0x88] sm:$0xff]
    %v414 = vld [vmem:[#allocation7 + $0x98] sm:$0xff]
    %v415 = vld [vmem:[#allocation7 + $0xa8] sm:$0xff]
    %v416 = vld [vmem:[#allocation7 + $0xb8] sm:$0xff]
    %v417 = vld [vmem:[#allocation7 + $0xc8] sm:$0xff]
    %v418 = vld [vmem:[#allocation7 + $0xd8] sm:$0xff]
    %v419 = vld [vmem:[#allocation7 + $0xe8] sm:$0xff]
    %v420 = vld [vmem:[#allocation7 + $0xf8] sm:$0xff]
    %s421 = scalar_lea.vmem [#allocation8], 3
    %v422 = vld [vmem:[%s421] ss:$8 sm:$0x3]
    %v424 = vlaneseq
    %v425 = vshrl.u32 %v424, 7
    %v426 = vsub.s32 0, %v425
    %v427 = vrot.slane %v422, %v426
    %v428 = vlaneseq
    %v429 = vshrl.u32 %v428, 7
    %v430 = vsub.s32 1, %v429
    %v431 = vrot.slane %v422, %v430
    %v450 = vunpack.c.l.b16 %v405
    %v451 = vunpack.c.h.b16 %v405
    %v452 = vunpack.c.l.b16 %v406
    %v453 = vunpack.c.h.b16 %v406
    %v454 = vunpack.c.l.b16 %v407
    %v455 = vunpack.c.h.b16 %v407
    %v456 = vunpack.c.l.b16 %v408
    %v457 = vunpack.c.h.b16 %v408
    %v458 = vunpack.c.l.b16 %v409
    %v459 = vunpack.c.h.b16 %v409
    %v460 = vunpack.c.l.b16 %v410
    %v461 = vunpack.c.h.b16 %v410
    %v462 = vunpack.c.l.b16 %v411
    %v463 = vunpack.c.h.b16 %v411
    %v464 = vunpack.c.l.b16 %v412
    %v465 = vunpack.c.h.b16 %v412
    %v466 = vunpack.c.l.b16 %v413
    %v467 = vunpack.c.h.b16 %v413
    %v468 = vunpack.c.l.b16 %v414
    %v469 = vunpack.c.h.b16 %v414
    %v470 = vunpack.c.l.b16 %v415
    %v471 = vunpack.c.h.b16 %v415
    %v472 = vunpack.c.l.b16 %v416
    %v473 = vunpack.c.h.b16 %v416
    %v474 = vunpack.c.l.b16 %v417
    %v475 = vunpack.c.h.b16 %v417
    %v476 = vunpack.c.l.b16 %v418
    %v477 = vunpack.c.h.b16 %v418
    %v478 = vunpack.c.l.b16 %v419
    %v479 = vunpack.c.h.b16 %v419
    %v480 = vunpack.c.l.b16 %v420
    %v481 = vunpack.c.h.b16 %v420
    %v482 = vpack.c.b16 %v452, %v450
    %v483 = vpack.c.b16 %v453, %v451
    %v484 = vpack.c.b16 %v456, %v454
    %v485 = vpack.c.b16 %v457, %v455
    %v486 = vpack.c.b16 %v460, %v458
    %v487 = vpack.c.b16 %v461, %v459
    %v488 = vpack.c.b16 %v464, %v462
    %v489 = vpack.c.b16 %v465, %v463
    %v490 = vpack.c.b16 %v468, %v466
    %v491 = vpack.c.b16 %v469, %v467
    %v492 = vpack.c.b16 %v472, %v470
    %v493 = vpack.c.b16 %v473, %v471
    %v494 = vpack.c.b16 %v476, %v474
    %v495 = vpack.c.b16 %v477, %v475
    %v496 = vpack.c.b16 %v480, %v478
    %v497 = vpack.c.b16 %v481, %v479
    %514 = vmatprep.subr.bf16.mxu0 %v497
    %515 = vmatpush1.bf16.msra.mxu0 %v496
    %516 = vmatprep.subr.bf16.mxu0 %v495
    %517 = vmatpush1.bf16.msra.mxu0 %v494
    %518 = vmatprep.subr.bf16.mxu0 %v493
    %519 = vmatpush1.bf16.msra.mxu0 %v492
    %520 = vmatprep.subr.bf16.mxu0 %v491
    %521 = vmatpush1.bf16.msra.mxu0 %v490
    %522 = vmatprep.subr.bf16.mxu0 %v489
    %523 = vmatpush1.bf16.msra.mxu0 %v488
    %524 = vmatprep.subr.bf16.mxu0 %v487
    %525 = vmatpush1.bf16.msra.mxu0 %v486
    %526 = vmatprep.subr.bf16.mxu0 %v485
    %527 = vmatpush1.bf16.msra.mxu0 %v484
    %528 = vmatprep.subr.bf16.mxu0 %v483
    %529 = vmatpush1.bf16.msra.mxu0 %v482
    %530 = vmatprep.subr.bf16.mxu0 0
    %531 = vmatpush2.bf16.msra.mxu0 0
    %532 = vmatprep.subr.bf16.mxu0 0
    %533 = vmatpush2.bf16.msra.mxu0 0
    %534 = vmatprep.subr.bf16.mxu0 0
    %535 = vmatpush2.bf16.msra.mxu0 0
    %536 = vmatprep.subr.bf16.mxu0 0
    %537 = vmatpush2.bf16.msra.mxu0 0
    %538 = vmatprep.subr.bf16.mxu0 0
    %539 = vmatpush2.bf16.msra.mxu0 0
    %540 = vmatprep.subr.bf16.mxu0 0
    %541 = vmatpush2.bf16.msra.mxu0 0
    %542 = vmatprep.subr.bf16.mxu0 0
    %543 = vmatpush2.bf16.msra.mxu0 0
    %544 = vmatprep.subr.bf16.mxu0 0
    %545 = vmatpush2.bf16.msra.mxu0 0
    %546 = vmatprep.mubr.bf16.mxu0 0
    %547 = vmatmul.mubr.bf16.gmra.mxu0 %v404
    %v548 = vpop.f32.mrf.mxu0
    %v549 = vadd.f32 %v427, %v548
    %v550 = vpop.f32.mrf.mxu0
    %v551 = vadd.f32 %v431, %v550
    %v552 = vpop.f32.mrf.mxu0
    %v553 = vadd.f32 %v427, %v552
    %v554 = vpop.f32.mrf.mxu0
    %v555 = vadd.f32 %v431, %v554
    %556 = vdwg.mxu0
    %v557 = vmax.f32 %v549, 0.0
    %v558 = vmax.f32 %v553, 0.0
    %v559 = vld [vmem:[#allocation8 + $0x4] ss:$0 sm:$0xff]
    %v560 = vld [vmem:[#allocation8 + $0x5] ss:$0 sm:$0xff]
    %v561 = vmul.f32 %v557, %v559
    %v562 = vmul.f32 %v558, %v559
    %563 = vadd.xlane.f32.xlu0 %v561
    %v564 = vpop.xlane.xlu0 %563
    %565 = vadd.xlane.f32.xlu0 %v562
    %v566 = vpop.xlane.xlu0 %565
    %v567 = vadd.f32 %v564, %v560
    %v568 = vadd.f32 %v566, %v560
    %570 = vset.pattern.permute.xlu0 0
    %571 = vperm.xlu0 %570, %v567
    %v572 = vpop.permute.xlu0 %571
    %575 = vset.pattern.permute.xlu0 0
    %576 = vperm.xlu0 %575, %v568
    %v577 = vpop.permute.xlu0 %576
    %v579 = vadd.f32 %v572, %v551
    %v580 = vadd.f32 %v577, %v555
    %581 = vst [vmem:[#allocation10] sm:$0xff] %v579
    %582 = vst [vmem:[#allocation10 + $0x8] sm:$0xff] %v580
    %p583 = scmp.lt.s32.totalorder 0, 0
    // Predicated region
    $region34: #{tpu_custom_call.1} parent=1 // pred_check
      %p584 = pneg %p583
    $region35: #{tpu_custom_call.1} parent=1 // pred_check_branch
      %586 = sbr.rel (%p584) target = $region37
    $region36: #{tpu_custom_call.1} parent=1 // pred_region
      %v587 = vadd.f32 %v551, %v555
      %588 = vadd.xlane.f32.xlu0 %v587
      %v589 = vpop.xlane.xlu0 %588
      %v590 = vrot.slane %v589, 4
      %v591 = vadd.f32 %v589, %v590
      %v592 = vrot.slane %v591, 2
      %v593 = vadd.f32 %v591, %v592
      %v594 = vrot.slane %v593, 1
      %v595 = vadd.f32 %v593, %v594
      %s596 = vtos %v595
      %v597 = vstv %s596
      %598 = vst [vmem:[#allocation11] sm:$0xff] %v597
    $region37: #{tpu_custom_call.1} parent=1 // pred_fallthru
      _
    %p599 = scmp.eq.s32.totalorder 0, 0
    // Predicated region
    $region38: #{tpu_custom_call.1} parent=1 // pred_check
      %p600 = pneg %p599
    $region39: #{tpu_custom_call.1} parent=1 // pred_check_branch
      %602 = sbr.rel (%p600) target = $region41
    $region40: #{tpu_custom_call.1} parent=1 // pred_region
      %v603 = vlaneseq
      %v604 = vshrl.u32 %v603, 7
      %v605 = vadd.s32 %v604, 8
      %s606 = smul.u32 0, 16
      %v607 = vstv %s606
      %v608 = vadd.s32 %v604, %v607
      %v609 = vadd.s32 %v605, %v607
      %vm610 = vcmp.lt.s32.totalorder %v608, 4
      %vm611 = vcmp.lt.s32.totalorder %v609, 4
      %v612 = vsel %vm610, %v551, 0.0
      %v613 = vsel %vm611, %v555, 0.0
      %v614 = vadd.f32 %v612, %v613
      %615 = vadd.xlane.f32.xlu0 %v614
      %v616 = vpop.xlane.xlu0 %615
      %v617 = vrot.slane %v616, 4
      %v618 = vadd.f32 %v616, %v617
      %v619 = vrot.slane %v618, 2
      %v620 = vadd.f32 %v618, %v619
      %v621 = vrot.slane %v620, 1
      %v622 = vadd.f32 %v620, %v621
      %s623 = vtos %v622
      %v624 = vstv %s623
      %625 = vst [vmem:[#allocation11] sm:$0xff] %v624
    $region41: #{tpu_custom_call.1} parent=1 // pred_fallthru
      _
    // Predicated region
    $region42: #{tpu_custom_call.1} parent=1 // pred_check
      _
    $region43: #{tpu_custom_call.1} parent=1 // pred_check_branch
      %627 = sbr.rel (0) target = $region45
    $region44: #{tpu_custom_call.1} parent=1 // pred_region
      %s629 = ssub.s32 256, 64
      %630 = vsyncadd [#allocation4], %s629
      %s631 = sshll.u32 [#allocation10], 4
      %s632 = int_to_ptr.vmem [resolvable:$true] %s631
      %637 = dma.vmem_to_hbm [thread:$0]  %s632, 64, %s4, [#allocation4], 64, 64, 4
    $region45: #{tpu_custom_call.1} parent=1 // pred_fallthru
      _
    // Predicated region
    $region46: #{tpu_custom_call.1} parent=1 // pred_check
      _
    $region47: #{tpu_custom_call.1} parent=1 // pred_check_branch
      %639 = sbr.rel (0) target = $region49
    $region48: #{tpu_custom_call.1} parent=1 // pred_region
      %s641 = ssub.s32 128, 128
      %642 = vsyncadd [#allocation12], %s641
      %s644 = sshll.u32 [#allocation11], 4
      %s645 = int_to_ptr.vmem [resolvable:$true] %s644
      %647 = dma.vmem_to_hbm [thread:$0]  %s645, 128, %s5, [#allocation12]
    $region49: #{tpu_custom_call.1} parent=1 // pred_fallthru
      _
    // Predicated region
    $region50: #{tpu_custom_call.1} parent=1 // pred_check
      _
    $region51: #{tpu_custom_call.1} parent=1 // pred_check_branch
      %649 = sbr.rel (0) target = $region53
    $region52: #{tpu_custom_call.1} parent=1 // pred_region
      %650 = dma.done [#allocation4], 256
    $region53: #{tpu_custom_call.1} parent=1 // pred_fallthru
      _
    // Predicated region
    $region54: #{tpu_custom_call.1} parent=1 // pred_check
      _
    $region55: #{tpu_custom_call.1} parent=1 // pred_check_branch
      %652 = sbr.rel (0) target = $region57
    $region56: #{tpu_custom_call.1} parent=1 // pred_region
      %653 = dma.done [#allocation12], 128
    $region57: #{tpu_custom_call.1} parent=1 // pred_fallthru
      _
    %654 = vsyncpa [#allocation3], 1
    %655 = vsyncpa [#allocation6], 1
    %656 = vsyncpa [#allocation9], 1
    %657 = vsyncpa [#allocation4], 1
    %658 = vsyncpa [#allocation12], 1

</llo_original>
